<compile_context>
chip_gen: v6e
topology: v6e:2x2x1
jax: 0.10.0
libtpu: 0.0.40
codegen_flags: <defaults>
</compile_context>

<pallas_src>
import jax
import jax.numpy as jnp
from jax.experimental import pallas as pl
from jax.experimental.pallas import tpu as pltpu

LANES = 128


def _packed_linear_add_kernel(x_ref, w_ref, c_ref, o_ref):
    # x: (TB, GROUP*IN)   GROUP=16 original rows packed per lane-row (free HBM view)
    # w: (GROUP*IN, 128)  block-diagonal replication of W.T (built once at setup)
    # c: (1, 128)         (bias + other) tiled GROUP times
    # o: (TB, 128)        16 output rows packed per lane-row (lane-dense, unmasked vst)
    o_ref[...] = (
        jnp.dot(
            x_ref[...],
            w_ref[...],
            preferred_element_type=jnp.float32,
            precision=jax.lax.Precision.HIGHEST,
        )
        + c_ref[...]
    ).astype(o_ref.dtype)


def init_params(key, in_features=3, out_features=8):
    """Builds the module parameters and all one-time (out-of-the-hot-path) prep."""
    k_w, k_b, k_o = jax.random.split(key, 3)
    weight = jax.random.normal(k_w, (out_features, in_features), jnp.float32) * 0.1
    bias = jax.random.normal(k_b, (out_features,), jnp.float32) * 0.1
    other = jax.random.normal(k_o, (out_features,), jnp.float32)  # models `self.other`

    wt = weight.T                      # (IN, OUT) — no per-call transpose
    c = bias + other                   # folded broadcast constant, (OUT,)

    if LANES % out_features == 0:
        group = LANES // out_features  # 16 rows packed per lane-row
        wblock = jax.scipy.linalg.block_diag(*([wt] * group))  # (GROUP*IN, GROUP*OUT)
        c_row = jnp.tile(c, group)[None, :]                     # (1, GROUP*OUT)
    else:
        group, wblock, c_row = 1, None, None                    # fall back to XLA path

    return dict(weight=weight, bias=bias, other=other,
                wt=wt, c=c, group=group, wblock=wblock, c_row=c_row)


def _choose_packed_tile(R, tbp_max=2048, tbp_min=256, target_steps=8):
    """Packed-row tile: big enough to amortize ~0.35us/step, >=8 steps when possible."""
    tbp = max(pl.cdiv(R, target_steps), tbp_min)
    tbp = min(tbp, tbp_max, R)
    tbp = max(8, (tbp // 8) * 8)       # sublane multiple, rounded down so tbp <= R
    return tbp


def model_forward(x, params, *, min_pallas_batch=1024):
    """x: (B, IN) f32.  Returns Linear(x) + other, shape (B, OUT)."""
    B, IN = x.shape
    wt, c = params["wt"], params["c"]
    OUT = wt.shape[1]
    group = params["group"]

    # Small-batch bypass: custom-call launch + pipeline setup dwarfs a ~100-FLOP problem.
    if B < min_pallas_batch or group == 1:
        return x @ wt + c

    # Pad to a multiple of GROUP rows so the packed reshape is a free row-major view.
    Bp = ((B + group - 1) // group) * group
    xpad = jnp.pad(x, ((0, Bp - B), (0, 0))) if Bp != B else x
    R = Bp // group
    xp = xpad.reshape(R, group * IN)          # free view: (R, 48)

    tbp = _choose_packed_tile(R)
    grid = (pl.cdiv(R, tbp),)

    outp = pl.pallas_call(
        _packed_linear_add_kernel,
        out_shape=jax.ShapeDtypeStruct((R, group * OUT), x.dtype),
        grid=grid,
        in_specs=[
            pl.BlockSpec((tbp, group * IN), lambda i: (i, 0)),          # batch-tiled input
            pl.BlockSpec((group * IN, group * OUT), lambda i: (0, 0)),  # resident weight
            pl.BlockSpec((1, group * OUT), lambda i: (0, 0)),           # resident constant
        ],
        out_specs=pl.BlockSpec((tbp, group * OUT), lambda i: (i, 0)),   # lane-dense output
        compiler_params=pltpu.CompilerParams(
            dimension_semantics=("parallel",),          # megacore / 2-TC sharding on v7x
            vmem_limit_bytes=32 * 1024 * 1024,          # explicit (v5e default is 16 MiB)
        ),
    )(xp, params["wblock"], params["c_row"])

    out = outp.reshape(Bp, OUT)                         # free view back to (Bp, 8)
    return out[:B] if Bp != B else out


if __name__ == "__main__":
    key = jax.random.PRNGKey(0)
    k_p, k_x1, k_x2, k_x3 = jax.random.split(key, 4)
    params = init_params(k_p)

    def ref(x):
        return x @ params["weight"].T + params["bias"] + params["other"]

    # (1) Module-sized input (batch=2): fused-XLA bypass path.
    x_small = jax.random.normal(k_x1, (2, 3), dtype=jnp.float32)
    out_small = jax.block_until_ready(model_forward(x_small, params))
    assert out_small.shape == (2, 8)
    assert jnp.allclose(out_small, ref(x_small), atol=1e-5, rtol=1e-5)

    # (2) Pallas path with a multi-step grid (B=16384 -> 1024 packed rows, 4 tiles).
    x_big = jax.random.normal(k_x2, (16384, 3), dtype=jnp.float32)
    out_big = jax.block_until_ready(model_forward(x_big, params))
    assert out_big.shape == (16384, 8)
    assert jnp.allclose(out_big, ref(x_big), atol=2e-3, rtol=2e-3)

    # (3) Pallas path with padding + remainder tile (B=1000, not a multiple of 16).
    x_odd = jax.random.normal(k_x3, (1000, 3), dtype=jnp.float32)
    out_odd = jax.block_until_ready(model_forward(x_odd, params, min_pallas_batch=1))
    assert out_odd.shape == (1000, 8)
    assert jnp.allclose(out_odd, ref(x_odd), atol=2e-3, rtol=2e-3)

    print("KERNEL_OK")
</pallas_src>

<mosaic_0001>
module attributes {stable_mosaic.version = 11 : i64} {
  func.func @_packed_linear_add_kernel(%arg0: i32, %arg1: memref<256x48xf32, #tpu.memory_space<vmem>>, %arg2: memref<48x128xf32, #tpu.memory_space<vmem>>, %arg3: memref<1x128xf32, #tpu.memory_space<vmem>>, %arg4: memref<256x128xf32, #tpu.memory_space<vmem>>) attributes {dimension_semantics = [#tpu.dimension_semantics<parallel>], iteration_bounds = array<i64: 4>, scalar_prefetch = 0 : i64, scratch_operands = 0 : i64, tpu.core_type = #tpu.core_type<tc>, window_params = [{transform_indices = @transform_0, window_bounds = array<i64: 256, 48>}, {pipeline_mode = #tpu.pipeline_mode<synchronous>, transform_indices = @transform_1, window_bounds = array<i64: 48, 128>}, {pipeline_mode = #tpu.pipeline_mode<synchronous>, transform_indices = @transform_2, window_bounds = array<i64: 1, 128>}, {transform_indices = @transform_3, window_bounds = array<i64: 256, 128>}]} {
    %c0 = arith.constant 0 : index
    %c0_0 = arith.constant 0 : index
    %0 = vector.load %arg1[%c0, %c0_0] : memref<256x48xf32, #tpu.memory_space<vmem>>, vector<256x48xf32>
    %c0_1 = arith.constant 0 : index
    %c0_2 = arith.constant 0 : index
    %1 = vector.load %arg2[%c0_1, %c0_2] : memref<48x128xf32, #tpu.memory_space<vmem>>, vector<48x128xf32>
    %cst = arith.constant dense<0.000000e+00> : vector<256x128xf32>
    %2 = tpu.matmul %0, %1, %cst {dimension_numbers = #tpu.dot_dimension_numbers<[1], [0], [0], [1], [0, 0, 1, 1], [], []>, precision = #tpu.contract_precision<fp32>} : vector<256x48xf32>, vector<48x128xf32>, vector<256x128xf32> -> vector<256x128xf32>
    %c0_3 = arith.constant 0 : index
    %c0_4 = arith.constant 0 : index
    %3 = vector.load %arg3[%c0_3, %c0_4] : memref<1x128xf32, #tpu.memory_space<vmem>>, vector<1x128xf32>
    %4 = vector.broadcast %3 : vector<1x128xf32> to vector<256x128xf32>
    %5 = arith.addf %2, %4 : vector<256x128xf32>
    %c0_5 = arith.constant 0 : index
    %c0_6 = arith.constant 0 : index
    %6 = vector.load %arg4[%c0_5, %c0_6] : memref<256x128xf32, #tpu.memory_space<vmem>>, vector<256x128xf32>
    tpu.vector_store %arg4[%c0_5, %c0_6], %5 {strides = array<i32>} : memref<256x128xf32, #tpu.memory_space<vmem>>, vector<256x128xf32>,
    return
  }
  func.func @transform_0(%arg0: i32) -> (i32, i32) {
    %c0_i32 = arith.constant 0 : i32
    %c0_i32_0 = arith.constant 0 : i32
    return %arg0, %c0_i32 : i32, i32
  }
  func.func @transform_1(%arg0: i32) -> (i32, i32) {
    %c0_i32 = arith.constant 0 : i32
    %c0_i32_0 = arith.constant 0 : i32
    %c0_i32_1 = arith.constant 0 : i32
    return %c0_i32, %c0_i32_0 : i32, i32
  }
  func.func @transform_2(%arg0: i32) -> (i32, i32) {
    %c0_i32 = arith.constant 0 : i32
    %c0_i32_0 = arith.constant 0 : i32
    %c0_i32_1 = arith.constant 0 : i32
    return %c0_i32, %c0_i32_0 : i32, i32
  }
  func.func @transform_3(%arg0: i32) -> (i32, i32) {
    %c0_i32 = arith.constant 0 : i32
    %c0_i32_0 = arith.constant 0 : i32
    return %arg0, %c0_i32 : i32, i32
  }
}

</mosaic_0001>

<llo_original>
// kernel: tpu_custom_call.1
$region0: #{tpu_custom_call.1}
  #allocation0 [shape = 'u32[]', space=smem, size = 0x4, offset = 0x4, fixed_abs, tag = 'smem constant byte address 0x4 - core index']
  #allocation1 [shape = 'u32[144,128]{1,0:T(1,128)}', space=vmem, size = 0x12000, scoped, tag = 'internal scratch']
  %s0 = inlined_call_operand.vmem [shape: f32[1024,48], index: 0, kind: input, shape index: {}]
  %s1 = inlined_call_operand.vmem [shape: f32[48,128], index: 1, kind: input, shape index: {}]
  %s2 = inlined_call_operand.vmem [shape: f32[1,128], index: 2, kind: input, shape index: {}]
  %s3 = inlined_call_operand.hbm [shape: f32[1024,128], index: 3, kind: output, shape index: {}]
  %s4 = sld [smem:[#allocation0]]
  $region45: #{tpu_custom_call.1} parent=0
    _
  %s6 = ssub.s32 1, %s4
  %s7 = scalar_select 0, %s6, %s4
  $region1: #{tpu_custom_call.1} parent=0
    #allocation2 [shape = 'u8[262144]{0}', space=vmem, size = 0x40000, scoped, tag = 'output window, operand 0']
    #allocation3 [shape = 's32[2]{0}', space=sflag, size = 0x8, scoped, tag = 'scoped memory for tpu_custom_call.1']
    %8 = vsyncpa [#allocation3], 0
    %s9 = scalar_lea.sflag [#allocation3], 1
    %10 = vsyncpa %s9, 0
    loop: start=0, step=1, limit=6
    $region2: #{tpu_custom_call.1} parent=1 // loop_pre_header
      _
    $region3: #{tpu_custom_call.1} parent=1 // loop_header
      %s12 = sphi 0, %s16
      %p13 = scmp.ge.s32.totalorder %s12, 6
      %s22 = sphi 0, %s24
      %s25 = sphi 0, %s22
      %s26 = sphi 0, %s25
      %s42 = sphi 0, %s26
      %s46 = sphi 0, %s46
      %s48 = sphi 0, %s46
      %s49 = sphi 0, %s48
      %s63 = sphi 0, %s49
      %s67 = sphi 0, %s67
      %s69 = sphi 0, %s67
      %s70 = sphi 0, %s69
      %s84 = sphi 0, %s70
      %s90 = sphi 0, %s92
      %s93 = sphi 0, %s90
      %s94 = sphi 0, %s93
      %s110 = sphi 0, %s94
    $region4: #{tpu_custom_call.1} parent=1 // loop_header_branch
      %15 = sbr.rel (%p13) target = $region8
    $region5: #{tpu_custom_call.1} parent=1 // loop_body
      %s17 = ssub.s32 %s12, 1
      %s18 = ssub.s32 %s12, 2
      %s19 = sadd.s32 %s12, 1
      %s20 = ssub.s32 %s12, %s19
      %p21 = scmp.eq.s32.totalorder %s20, 0
      %s23 = sadd.s32 %s22, 1
      %s24 = scalar_select %p21, %s22, %s23
      %p27 = pneg %p21
      %p28 = scmp.eq.s32.totalorder %s12, 3
      %p29 = por %p27, %p28
      %p30 = scmp.ne.s32.totalorder %s22, %s25
      %p31 = scmp.eq.s32.totalorder %s12, 0
      %p32 = por %p30, %p31
      %p33 = scmp.ne.s32.totalorder %s22, %s25
      %p34 = scmp.eq.s32.totalorder %s17, 3
      %p35 = por %p33, %p34
      %p36 = scmp.ne.s32.totalorder %s25, %s26
      %p37 = scmp.eq.s32.totalorder %s17, 0
      %p38 = por %p36, %p37
      %p39 = scmp.ne.s32.totalorder %s25, %s26
      %p40 = scmp.eq.s32.totalorder %s18, 3
      %p41 = por %p39, %p40
      %p43 = scmp.ne.s32.totalorder %s26, %s42
      %p44 = scmp.eq.s32.totalorder %s18, 0
      %p45 = por %p43, %p44
      %s47 = sadd.s32 %s46, 1
      %p50 = scmp.eq.s32.totalorder %s12, 3
      %p51 = scmp.ne.s32.totalorder %s46, %s48
      %p52 = scmp.eq.s32.totalorder %s12, 0
      %p53 = por %p51, %p52
      %p54 = scmp.ne.s32.totalorder %s46, %s48
      %p55 = scmp.eq.s32.totalorder %s17, 3
      %p56 = por %p54, %p55
      %p57 = scmp.ne.s32.totalorder %s48, %s49
      %p58 = scmp.eq.s32.totalorder %s17, 0
      %p59 = por %p57, %p58
      %p60 = scmp.ne.s32.totalorder %s48, %s49
      %p61 = scmp.eq.s32.totalorder %s18, 3
      %p62 = por %p60, %p61
      %p64 = scmp.ne.s32.totalorder %s49, %s63
      %p65 = scmp.eq.s32.totalorder %s18, 0
      %p66 = por %p64, %p65
      %s68 = sadd.s32 %s67, 1
      %p71 = scmp.eq.s32.totalorder %s12, 3
      %p72 = scmp.ne.s32.totalorder %s67, %s69
      %p73 = scmp.eq.s32.totalorder %s12, 0
      %p74 = por %p72, %p73
      %p75 = scmp.ne.s32.totalorder %s67, %s69
      %p76 = scmp.eq.s32.totalorder %s17, 3
      %p77 = por %p75, %p76
      %p78 = scmp.ne.s32.totalorder %s69, %s70
      %p79 = scmp.eq.s32.totalorder %s17, 0
      %p80 = por %p78, %p79
      %p81 = scmp.ne.s32.totalorder %s69, %s70
      %p82 = scmp.eq.s32.totalorder %s18, 3
      %p83 = por %p81, %p82
      %p85 = scmp.ne.s32.totalorder %s70, %s84
      %p86 = scmp.eq.s32.totalorder %s18, 0
      %p87 = por %p85, %p86
      %s88 = ssub.s32 %s12, %s19
      %p89 = scmp.eq.s32.totalorder %s88, 0
      %s91 = sadd.s32 %s90, 1
      %s92 = scalar_select %p89, %s90, %s91
      %p95 = pneg %p89
      %p96 = scmp.eq.s32.totalorder %s12, 3
      %p97 = por %p95, %p96
      %p98 = scmp.ne.s32.totalorder %s90, %s93
      %p99 = scmp.eq.s32.totalorder %s12, 0
      %p100 = por %p98, %p99
      %p101 = scmp.ne.s32.totalorder %s90, %s93
      %p102 = scmp.eq.s32.totalorder %s17, 3
      %p103 = por %p101, %p102
      %p104 = scmp.ne.s32.totalorder %s93, %s94
      %p105 = scmp.eq.s32.totalorder %s17, 0
      %p106 = por %p104, %p105
      %p107 = scmp.ne.s32.totalorder %s93, %s94
      %p108 = scmp.eq.s32.totalorder %s18, 3
      %p109 = por %p107, %p108
      %p111 = scmp.ne.s32.totalorder %s94, %s110
      %p112 = scmp.eq.s32.totalorder %s18, 0
      %p113 = por %p111, %p112
      %p114 = scmp.le.s32.totalorder 1, %s12
      %p115 = scmp.lt.s32.totalorder %s12, 5
      %p116 = pnand %p114, %p115
      %p117 = pneg %p116
      // Predicated region
      $region9: #{tpu_custom_call.1} parent=5 // pred_check
        _
      $region10: #{tpu_custom_call.1} parent=5 // pred_check_branch
        %119 = sbr.rel (%p116) target = $region12
      $region11: #{tpu_custom_call.1} parent=5 // pred_region
        %s120 = ssub.s32 %s12, 1
        // Predicated region
        $region13: #{tpu_custom_call.1} parent=11 // pred_check
          %p121 = pneg %p59
        $region14: #{tpu_custom_call.1} parent=11 // pred_check_branch
          %123 = sbr.rel (%p121) target = $region16
        $region15: #{tpu_custom_call.1} parent=11 // pred_region
          _
        $region16: #{tpu_custom_call.1} parent=11 // pred_fallthru
          _
        // Predicated region
        $region17: #{tpu_custom_call.1} parent=11 // pred_check
          %p124 = pneg %p80
        $region18: #{tpu_custom_call.1} parent=11 // pred_check_branch
          %126 = sbr.rel (%p124) target = $region20
        $region19: #{tpu_custom_call.1} parent=11 // pred_region
          _
        $region20: #{tpu_custom_call.1} parent=11 // pred_fallthru
          _
      $region12: #{tpu_custom_call.1} parent=5 // pred_fallthru
        _
      %p127 = scmp.lt.s32.totalorder %s12, 4
      // Predicated region
      $region21: #{tpu_custom_call.1} parent=5 // pred_check
        %p128 = pneg %p127
      $region22: #{tpu_custom_call.1} parent=5 // pred_check_branch
        %130 = sbr.rel (%p128) target = $region24
      $region23: #{tpu_custom_call.1} parent=5 // pred_region
        // Predicated region
        $region25: #{tpu_custom_call.1} parent=23 // pred_check
          %p131 = pneg %p32
        $region26: #{tpu_custom_call.1} parent=23 // pred_check_branch
          %133 = sbr.rel (%p131) target = $region28
        $region27: #{tpu_custom_call.1} parent=23 // pred_region
          %s134 = smul.u32 32, %s12
          %p135 = scmp.lt.s32.totalorder %s134, 127
          %s136 = scalar_select %p135, %s134, 127
          %s137 = smul.addr %s136, 8
          %s138 = scalar_lea.vmem %s0, %s137
          %s139 = smul.u32 32, %s12
        $region28: #{tpu_custom_call.1} parent=23 // pred_fallthru
          _
      $region24: #{tpu_custom_call.1} parent=5 // pred_fallthru
        _
      %p140 = scmp.le.s32.totalorder 1, %s12
      %p141 = scmp.lt.s32.totalorder %s12, 5
      %p142 = pnand %p140, %p141
      %p143 = pneg %p142
      // Predicated region
      $region29: #{tpu_custom_call.1} parent=5 // pred_check
        _
      $region30: #{tpu_custom_call.1} parent=5 // pred_check_branch
        %145 = sbr.rel (%p142) target = $region32
      $region31: #{tpu_custom_call.1} parent=5 // pred_region
        %s146 = ssub.s32 %s12, 1
        %s147 = smul.u32 32, %s17
        %p148 = scmp.lt.s32.totalorder %s147, 127
        %s149 = scalar_select %p148, %s147, 127
        %s150 = smul.addr %s149, 8
        %s151 = scalar_lea.vmem %s0, %s150
        %p152 = pneg %p38
        %p153 = pneg %p35
        %p154 = pneg %p59
        %p155 = pneg %p56
        %p156 = pneg %p80
        %p157 = pneg %p77
        %p158 = pneg %p106
        %p159 = pneg %p103
        %s160 = sand.u32 %s93, 1
        %s161 = scalar_lea.sflag [#allocation3], %s160
        %s162 = sand.u32 %s93, 1
        %s163 = smul.addr %s162, 256
        %s164 = scalar_lea.vmem [#allocation2], %s163
        %s165 = smul.u32 32, %s17
        %p166 = scmp.lt.s32.totalorder %s165, 127
        %s167 = scalar_select %p166, %s165, 127
        %s168 = smul.addr %s167, 8
        %s169 = scalar_lea.vmem %s0, %s168
        %s170 = smul.u32 32, %s17
        %s171 = smul.u32 32, %s17
        %v172 = vld [vmem:[%s169] sm:$0xff]
        %v173 = vld [vmem:[%s169 + $0x8] sm:$0xff]
        %v174 = vld [vmem:[%s169 + $0x10] sm:$0xff]
        %v175 = vld [vmem:[%s169 + $0x18] sm:$0xff]
        %v176 = vld [vmem:[%s169 + $0x20] sm:$0xff]
        %v177 = vld [vmem:[%s169 + $0x28] sm:$0xff]
        %v178 = vld [vmem:[%s169 + $0x30] sm:$0xff]
        %v179 = vld [vmem:[%s169 + $0x38] sm:$0xff]
        %v180 = vld [vmem:[%s169 + $0x40] sm:$0xff]
        %v181 = vld [vmem:[%s169 + $0x48] sm:$0xff]
        %v182 = vld [vmem:[%s169 + $0x50] sm:$0xff]
        %v183 = vld [vmem:[%s169 + $0x58] sm:$0xff]
        %v184 = vld [vmem:[%s169 + $0x60] sm:$0xff]
        %v185 = vld [vmem:[%s169 + $0x68] sm:$0xff]
        %v186 = vld [vmem:[%s169 + $0x70] sm:$0xff]
        %v187 = vld [vmem:[%s169 + $0x78] sm:$0xff]
        %v188 = vld [vmem:[%s169 + $0x80] sm:$0xff]
        %v189 = vld [vmem:[%s169 + $0x88] sm:$0xff]
        %v190 = vld [vmem:[%s169 + $0x90] sm:$0xff]
        %v191 = vld [vmem:[%s169 + $0x98] sm:$0xff]
        %v192 = vld [vmem:[%s169 + $0xa0] sm:$0xff]
        %v193 = vld [vmem:[%s169 + $0xa8] sm:$0xff]
        %v194 = vld [vmem:[%s169 + $0xb0] sm:$0xff]
        %v195 = vld [vmem:[%s169 + $0xb8] sm:$0xff]
        %v196 = vld [vmem:[%s169 + $0xc0] sm:$0xff]
        %v197 = vld [vmem:[%s169 + $0xc8] sm:$0xff]
        %v198 = vld [vmem:[%s169 + $0xd0] sm:$0xff]
        %v199 = vld [vmem:[%s169 + $0xd8] sm:$0xff]
        %v200 = vld [vmem:[%s169 + $0xe0] sm:$0xff]
        %v201 = vld [vmem:[%s169 + $0xe8] sm:$0xff]
        %v202 = vld [vmem:[%s169 + $0xf0] sm:$0xff]
        %v203 = vld [vmem:[%s169 + $0xf8] sm:$0xff]
        %v204 = vld [vmem:[%s1] sm:$0xff]
        %v205 = vld [vmem:[%s1 + $0x8] sm:$0xff]
        %v206 = vld [vmem:[%s1 + $0x10] sm:$0xff]
        %v207 = vld [vmem:[%s1 + $0x18] sm:$0xff]
        %v208 = vld [vmem:[%s1 + $0x20] sm:$0xff]
        %v209 = vld [vmem:[%s1 + $0x28] sm:$0xff]
        %v210 = vld [vmem:[%s2] sm:$0x1]
        %v212 = vlaneseq
        %v213 = vshrl.u32 %v212, 7
        %v214 = vsub.s32 0, %v213
        %v215 = vrot.slane %v210, %v214
        %vm217 = vcmask 392192
        %v219 = vsel %vm217, %v172, 0
        %v222 = vsel %vm217, %v173, 0
        %v225 = vsel %vm217, %v174, 0
        %v228 = vsel %vm217, %v175, 0
        %v231 = vsel %vm217, %v176, 0
        %v234 = vsel %vm217, %v177, 0
        %v237 = vsel %vm217, %v178, 0
        %v240 = vsel %vm217, %v179, 0
        %v243 = vsel %vm217, %v180, 0
        %v246 = vsel %vm217, %v181, 0
        %v249 = vsel %vm217, %v182, 0
        %v252 = vsel %vm217, %v183, 0
        %v255 = vsel %vm217, %v184, 0
        %v258 = vsel %vm217, %v185, 0
        %v261 = vsel %vm217, %v186, 0
        %v264 = vsel %vm217, %v187, 0
        %v267 = vsel %vm217, %v188, 0
        %v270 = vsel %vm217, %v189, 0
        %v273 = vsel %vm217, %v190, 0
        %v276 = vsel %vm217, %v191, 0
        %v279 = vsel %vm217, %v192, 0
        %v282 = vsel %vm217, %v193, 0
        %v285 = vsel %vm217, %v194, 0
        %v288 = vsel %vm217, %v195, 0
        %v291 = vsel %vm217, %v196, 0
        %v294 = vsel %vm217, %v197, 0
        %v297 = vsel %vm217, %v198, 0
        %v300 = vsel %vm217, %v199, 0
        %v303 = vsel %vm217, %v200, 0
        %v306 = vsel %vm217, %v201, 0
        %v309 = vsel %vm217, %v202, 0
        %v312 = vsel %vm217, %v203, 0
        %314 = vmatprep.subr.mxu0 0.0
        %315 = vmatpush1.msra.mxu0 0.0
        %316 = vmatprep.subr.mxu0 0.0
        %317 = vmatpush1.msra.mxu0 0.0
        %318 = vmatprep.subr.mxu0 0.0
        %319 = vmatpush1.msra.mxu0 0.0
        %320 = vmatprep.subr.mxu0 0.0
        %321 = vmatpush1.msra.mxu0 0.0
        %322 = vmatprep.subr.mxu0 0.0
        %323 = vmatpush1.msra.mxu0 0.0
        %324 = vmatprep.subr.mxu0 0.0
        %325 = vmatpush1.msra.mxu0 0.0
        %326 = vmatprep.subr.mxu0 0.0
        %327 = vmatpush1.msra.mxu0 0.0
        %328 = vmatprep.subr.mxu0 0.0
        %329 = vmatpush1.msra.mxu0 0.0
        %330 = vmatprep.subr.mxu0 0.0
        %331 = vmatpush1.msra.mxu0 0.0
        %332 = vmatprep.subr.mxu0 0.0
        %333 = vmatpush1.msra.mxu0 0.0
        %334 = vmatprep.subr.mxu0 0.0
        %v335 = vand.u32 %v209, 4294901760
        %336 = vmatpush1.msra.mxu0 %v335
        %337 = vmatprep.subr.mxu0 0.0
        %v338 = vand.u32 %v208, 4294901760
        %339 = vmatpush1.msra.mxu0 %v338
        %340 = vmatprep.subr.mxu0 0.0
        %v341 = vand.u32 %v207, 4294901760
        %342 = vmatpush1.msra.mxu0 %v341
        %343 = vmatprep.subr.mxu0 0.0
        %v344 = vand.u32 %v206, 4294901760
        %345 = vmatpush1.msra.mxu0 %v344
        %346 = vmatprep.subr.mxu0 0.0
        %v347 = vand.u32 %v205, 4294901760
        %348 = vmatpush1.msra.mxu0 %v347
        %349 = vmatprep.subr.mxu0 0.0
        %v350 = vand.u32 %v204, 4294901760
        %351 = vmatpush1.msra.mxu0 %v350
        %352 = vmatprep.subr.mxu0 0.0
        %353 = vmatpush2.msra.mxu0 0.0
        %354 = vmatprep.subr.mxu0 0.0
        %355 = vmatpush2.msra.mxu0 0.0
        %356 = vmatprep.subr.mxu0 0.0
        %357 = vmatpush2.msra.mxu0 0.0
        %358 = vmatprep.subr.mxu0 0.0
        %359 = vmatpush2.msra.mxu0 0.0
        %360 = vmatprep.subr.mxu0 0.0
        %361 = vmatpush2.msra.mxu0 0.0
        %362 = vmatprep.subr.mxu0 0.0
        %363 = vmatpush2.msra.mxu0 0.0
        %364 = vmatprep.subr.mxu0 0.0
        %365 = vmatpush2.msra.mxu0 0.0
        %366 = vmatprep.subr.mxu0 0.0
        %367 = vmatpush2.msra.mxu0 0.0
        %368 = vmatprep.subr.mxu0 0.0
        %369 = vmatpush2.msra.mxu0 0.0
        %370 = vmatprep.subr.mxu0 0.0
        %371 = vmatpush2.msra.mxu0 0.0
        %372 = vmatprep.subr.mxu0 0.0
        %373 = vmatpush2.msra.mxu0 0.0
        %374 = vmatprep.subr.mxu0 0.0
        %375 = vmatpush2.msra.mxu0 0.0
        %376 = vmatprep.subr.mxu0 0.0
        %377 = vmatpush2.msra.mxu0 0.0
        %378 = vmatprep.subr.mxu0 0.0
        %379 = vmatpush2.msra.mxu0 0.0
        %380 = vmatprep.subr.mxu0 0.0
        %381 = vmatpush2.msra.mxu0 0.0
        %382 = vmatprep.subr.mxu0 0.0
        %383 = vmatpush2.msra.mxu0 0.0
        %384 = vmatprep.mubr.f32.mxu0 0.0
        %v385 = vand.u32 %v219, 4294901760
        %v386 = vsub.f32 %v219, %v385
        %v387 = vand.u32 %v386, 4294901760
        %v388 = vsub.f32 %v386, %v387
        %v389 = vand.u32 %v388, 4294901760
        %390 = vmatmul.mubr.f32.gmra.mxu0 %v389
        %v391 = vpop.f32.mrf.mxu0
        %v392 = vadd.f32 %v215, %v391
        %v393 = vpop.f32.mrf.mxu0
        %394 = vmatprep.mubr.f32.mxu0 0.0
        %v395 = vand.u32 %v222, 4294901760
        %v396 = vsub.f32 %v222, %v395
        %v397 = vand.u32 %v396, 4294901760
        %v398 = vsub.f32 %v396, %v397
        %v399 = vand.u32 %v398, 4294901760
        %400 = vmatmul.mubr.f32.gmra.mxu0 %v399
        %v401 = vpop.f32.mrf.mxu0
        %v402 = vadd.f32 %v215, %v401
        %v403 = vpop.f32.mrf.mxu0
        %404 = vmatprep.mubr.f32.mxu0 0.0
        %v405 = vand.u32 %v225, 4294901760
        %v406 = vsub.f32 %v225, %v405
        %v407 = vand.u32 %v406, 4294901760
        %v408 = vsub.f32 %v406, %v407
        %v409 = vand.u32 %v408, 4294901760
        %410 = vmatmul.mubr.f32.gmra.mxu0 %v409
        %v411 = vpop.f32.mrf.mxu0
        %v412 = vadd.f32 %v215, %v411
        %v413 = vpop.f32.mrf.mxu0
        %414 = vmatprep.mubr.f32.mxu0 0.0
        %v415 = vand.u32 %v228, 4294901760
        %v416 = vsub.f32 %v228, %v415
        %v417 = vand.u32 %v416, 4294901760
        %v418 = vsub.f32 %v416, %v417
        %v419 = vand.u32 %v418, 4294901760
        %420 = vmatmul.mubr.f32.gmra.mxu0 %v419
        %v421 = vpop.f32.mrf.mxu0
        %v422 = vadd.f32 %v215, %v421
        %v423 = vpop.f32.mrf.mxu0
        %424 = vmatprep.mubr.f32.mxu0 0.0
        %v425 = vand.u32 %v231, 4294901760
        %v426 = vsub.f32 %v231, %v425
        %v427 = vand.u32 %v426, 4294901760
        %v428 = vsub.f32 %v426, %v427
        %v429 = vand.u32 %v428, 4294901760
        %430 = vmatmul.mubr.f32.gmra.mxu0 %v429
        %v431 = vpop.f32.mrf.mxu0
        %v432 = vadd.f32 %v215, %v431
        %v433 = vpop.f32.mrf.mxu0
        %434 = vmatprep.mubr.f32.mxu0 0.0
        %v435 = vand.u32 %v234, 4294901760
        %v436 = vsub.f32 %v234, %v435
        %v437 = vand.u32 %v436, 4294901760
        %v438 = vsub.f32 %v436, %v437
        %v439 = vand.u32 %v438, 4294901760
        %440 = vmatmul.mubr.f32.gmra.mxu0 %v439
        %v441 = vpop.f32.mrf.mxu0
        %v442 = vadd.f32 %v215, %v441
        %v443 = vpop.f32.mrf.mxu0
        %444 = vmatprep.mubr.f32.mxu0 0.0
        %v445 = vand.u32 %v237, 4294901760
        %v446 = vsub.f32 %v237, %v445
        %v447 = vand.u32 %v446, 4294901760
        %v448 = vsub.f32 %v446, %v447
        %v449 = vand.u32 %v448, 4294901760
        %450 = vmatmul.mubr.f32.gmra.mxu0 %v449
        %v451 = vpop.f32.mrf.mxu0
        %v452 = vadd.f32 %v215, %v451
        %v453 = vpop.f32.mrf.mxu0
        %454 = vmatprep.mubr.f32.mxu0 0.0
        %v455 = vand.u32 %v240, 4294901760
        %v456 = vsub.f32 %v240, %v455
        %v457 = vand.u32 %v456, 4294901760
        %v458 = vsub.f32 %v456, %v457
        %v459 = vand.u32 %v458, 4294901760
        %460 = vmatmul.mubr.f32.gmra.mxu0 %v459
        %v461 = vpop.f32.mrf.mxu0
        %v462 = vadd.f32 %v215, %v461
        %v463 = vpop.f32.mrf.mxu0
        %464 = vmatprep.mubr.f32.mxu0 0.0
        %v465 = vand.u32 %v243, 4294901760
        %v466 = vsub.f32 %v243, %v465
        %v467 = vand.u32 %v466, 4294901760
        %v468 = vsub.f32 %v466, %v467
        %v469 = vand.u32 %v468, 4294901760
        %470 = vmatmul.mubr.f32.gmra.mxu0 %v469
        %v471 = vpop.f32.mrf.mxu0
        %v472 = vadd.f32 %v215, %v471
        %v473 = vpop.f32.mrf.mxu0
        %474 = vmatprep.mubr.f32.mxu0 0.0
        %v475 = vand.u32 %v246, 4294901760
        %v476 = vsub.f32 %v246, %v475
        %v477 = vand.u32 %v476, 4294901760
        %v478 = vsub.f32 %v476, %v477
        %v479 = vand.u32 %v478, 4294901760
        %480 = vmatmul.mubr.f32.gmra.mxu0 %v479
        %v481 = vpop.f32.mrf.mxu0
        %v482 = vadd.f32 %v215, %v481
        %v483 = vpop.f32.mrf.mxu0
        %484 = vmatprep.mubr.f32.mxu0 0.0
        %v485 = vand.u32 %v249, 4294901760
        %v486 = vsub.f32 %v249, %v485
        %v487 = vand.u32 %v486, 4294901760
        %v488 = vsub.f32 %v486, %v487
        %v489 = vand.u32 %v488, 4294901760
        %490 = vmatmul.mubr.f32.gmra.mxu0 %v489
        %v491 = vpop.f32.mrf.mxu0
        %v492 = vadd.f32 %v215, %v491
        %v493 = vpop.f32.mrf.mxu0
        %494 = vmatprep.mubr.f32.mxu0 0.0
        %v495 = vand.u32 %v252, 4294901760
        %v496 = vsub.f32 %v252, %v495
        %v497 = vand.u32 %v496, 4294901760
        %v498 = vsub.f32 %v496, %v497
        %v499 = vand.u32 %v498, 4294901760
        %500 = vmatmul.mubr.f32.gmra.mxu0 %v499
        %v501 = vpop.f32.mrf.mxu0
        %v502 = vadd.f32 %v215, %v501
        %v503 = vpop.f32.mrf.mxu0
        %504 = vmatprep.mubr.f32.mxu0 0.0
        %v505 = vand.u32 %v255, 4294901760
        %v506 = vsub.f32 %v255, %v505
        %v507 = vand.u32 %v506, 4294901760
        %v508 = vsub.f32 %v506, %v507
        %v509 = vand.u32 %v508, 4294901760
        %510 = vmatmul.mubr.f32.gmra.mxu0 %v509
        %v511 = vpop.f32.mrf.mxu0
        %v512 = vadd.f32 %v215, %v511
        %v513 = vpop.f32.mrf.mxu0
        %514 = vmatprep.mubr.f32.mxu0 0.0
        %v515 = vand.u32 %v258, 4294901760
        %v516 = vsub.f32 %v258, %v515
        %v517 = vand.u32 %v516, 4294901760
        %v518 = vsub.f32 %v516, %v517
        %v519 = vand.u32 %v518, 4294901760
        %520 = vmatmul.mubr.f32.gmra.mxu0 %v519
        %v521 = vpop.f32.mrf.mxu0
        %v522 = vadd.f32 %v215, %v521
        %v523 = vpop.f32.mrf.mxu0
        %524 = vmatprep.mubr.f32.mxu0 0.0
        %v525 = vand.u32 %v261, 4294901760
        %v526 = vsub.f32 %v261, %v525
        %v527 = vand.u32 %v526, 4294901760
        %v528 = vsub.f32 %v526, %v527
        %v529 = vand.u32 %v528, 4294901760
        %530 = vmatmul.mubr.f32.gmra.mxu0 %v529
        %v531 = vpop.f32.mrf.mxu0
        %v532 = vadd.f32 %v215, %v531
        %v533 = vpop.f32.mrf.mxu0
        %534 = vmatprep.mubr.f32.mxu0 0.0
        %v535 = vand.u32 %v264, 4294901760
        %v536 = vsub.f32 %v264, %v535
        %v537 = vand.u32 %v536, 4294901760
        %v538 = vsub.f32 %v536, %v537
        %v539 = vand.u32 %v538, 4294901760
        %540 = vmatmul.mubr.f32.gmra.mxu0 %v539
        %v541 = vpop.f32.mrf.mxu0
        %v542 = vadd.f32 %v215, %v541
        %v543 = vpop.f32.mrf.mxu0
        %544 = vmatprep.mubr.f32.mxu0 0.0
        %v545 = vand.u32 %v267, 4294901760
        %v546 = vsub.f32 %v267, %v545
        %v547 = vand.u32 %v546, 4294901760
        %v548 = vsub.f32 %v546, %v547
        %v549 = vand.u32 %v548, 4294901760
        %550 = vmatmul.mubr.f32.gmra.mxu0 %v549
        %v551 = vpop.f32.mrf.mxu0
        %v552 = vadd.f32 %v215, %v551
        %v553 = vpop.f32.mrf.mxu0
        %554 = vmatprep.mubr.f32.mxu0 0.0
        %v555 = vand.u32 %v270, 4294901760
        %v556 = vsub.f32 %v270, %v555
        %v557 = vand.u32 %v556, 4294901760
        %v558 = vsub.f32 %v556, %v557
        %v559 = vand.u32 %v558, 4294901760
        %560 = vmatmul.mubr.f32.gmra.mxu0 %v559
        %v561 = vpop.f32.mrf.mxu0
        %v562 = vadd.f32 %v215, %v561
        %v563 = vpop.f32.mrf.mxu0
        %564 = vmatprep.mubr.f32.mxu0 0.0
        %v565 = vand.u32 %v273, 4294901760
        %v566 = vsub.f32 %v273, %v565
        %v567 = vand.u32 %v566, 4294901760
        %v568 = vsub.f32 %v566, %v567
        %v569 = vand.u32 %v568, 4294901760
        %570 = vmatmul.mubr.f32.gmra.mxu0 %v569
        %v571 = vpop.f32.mrf.mxu0
        %v572 = vadd.f32 %v215, %v571
        %v573 = vpop.f32.mrf.mxu0
        %574 = vmatprep.mubr.f32.mxu0 0.0
        %v575 = vand.u32 %v276, 4294901760
        %v576 = vsub.f32 %v276, %v575
        %v577 = vand.u32 %v576, 4294901760
        %v578 = vsub.f32 %v576, %v577
        %v579 = vand.u32 %v578, 4294901760
        %580 = vmatmul.mubr.f32.gmra.mxu0 %v579
        %v581 = vpop.f32.mrf.mxu0
        %v582 = vadd.f32 %v215, %v581
        %v583 = vpop.f32.mrf.mxu0
        %584 = vmatprep.mubr.f32.mxu0 0.0
        %v585 = vand.u32 %v279, 4294901760
        %v586 = vsub.f32 %v279, %v585
        %v587 = vand.u32 %v586, 4294901760
        %v588 = vsub.f32 %v586, %v587
        %v589 = vand.u32 %v588, 4294901760
        %590 = vmatmul.mubr.f32.gmra.mxu0 %v589
        %v591 = vpop.f32.mrf.mxu0
        %v592 = vadd.f32 %v215, %v591
        %v593 = vpop.f32.mrf.mxu0
        %594 = vmatprep.mubr.f32.mxu0 0.0
        %v595 = vand.u32 %v282, 4294901760
        %v596 = vsub.f32 %v282, %v595
        %v597 = vand.u32 %v596, 4294901760
        %v598 = vsub.f32 %v596, %v597
        %v599 = vand.u32 %v598, 4294901760
        %600 = vmatmul.mubr.f32.gmra.mxu0 %v599
        %v601 = vpop.f32.mrf.mxu0
        %v602 = vadd.f32 %v215, %v601
        %v603 = vpop.f32.mrf.mxu0
        %604 = vmatprep.mubr.f32.mxu0 0.0
        %v605 = vand.u32 %v285, 4294901760
        %v606 = vsub.f32 %v285, %v605
        %v607 = vand.u32 %v606, 4294901760
        %v608 = vsub.f32 %v606, %v607
        %v609 = vand.u32 %v608, 4294901760
        %610 = vmatmul.mubr.f32.gmra.mxu0 %v609
        %v611 = vpop.f32.mrf.mxu0
        %v612 = vadd.f32 %v215, %v611
        %v613 = vpop.f32.mrf.mxu0
        %614 = vmatprep.mubr.f32.mxu0 0.0
        %v615 = vand.u32 %v288, 4294901760
        %v616 = vsub.f32 %v288, %v615
        %v617 = vand.u32 %v616, 4294901760
        %v618 = vsub.f32 %v616, %v617
        %v619 = vand.u32 %v618, 4294901760
        %620 = vmatmul.mubr.f32.gmra.mxu0 %v619
        %v621 = vpop.f32.mrf.mxu0
        %v622 = vadd.f32 %v215, %v621
        %v623 = vpop.f32.mrf.mxu0
        %624 = vmatprep.mubr.f32.mxu0 0.0
        %v625 = vand.u32 %v291, 4294901760
        %v626 = vsub.f32 %v291, %v625
        %v627 = vand.u32 %v626, 4294901760
        %v628 = vsub.f32 %v626, %v627
        %v629 = vand.u32 %v628, 4294901760
        %630 = vmatmul.mubr.f32.gmra.mxu0 %v629
        %v631 = vpop.f32.mrf.mxu0
        %v632 = vadd.f32 %v215, %v631
        %v633 = vpop.f32.mrf.mxu0
        %634 = vmatprep.mubr.f32.mxu0 0.0
        %v635 = vand.u32 %v294, 4294901760
        %v636 = vsub.f32 %v294, %v635
        %v637 = vand.u32 %v636, 4294901760
        %v638 = vsub.f32 %v636, %v637
        %v639 = vand.u32 %v638, 4294901760
        %640 = vmatmul.mubr.f32.gmra.mxu0 %v639
        %v641 = vpop.f32.mrf.mxu0
        %v642 = vadd.f32 %v215, %v641
        %v643 = vpop.f32.mrf.mxu0
        %644 = vmatprep.mubr.f32.mxu0 0.0
        %v645 = vand.u32 %v297, 4294901760
        %v646 = vsub.f32 %v297, %v645
        %v647 = vand.u32 %v646, 4294901760
        %v648 = vsub.f32 %v646, %v647
        %v649 = vand.u32 %v648, 4294901760
        %650 = vmatmul.mubr.f32.gmra.mxu0 %v649
        %v651 = vpop.f32.mrf.mxu0
        %v652 = vadd.f32 %v215, %v651
        %v653 = vpop.f32.mrf.mxu0
        %654 = vmatprep.mubr.f32.mxu0 0.0
        %v655 = vand.u32 %v300, 4294901760
        %v656 = vsub.f32 %v300, %v655
        %v657 = vand.u32 %v656, 4294901760
        %v658 = vsub.f32 %v656, %v657
        %v659 = vand.u32 %v658, 4294901760
        %660 = vmatmul.mubr.f32.gmra.mxu0 %v659
        %v661 = vpop.f32.mrf.mxu0
        %v662 = vadd.f32 %v215, %v661
        %v663 = vpop.f32.mrf.mxu0
        %664 = vmatprep.mubr.f32.mxu0 0.0
        %v665 = vand.u32 %v303, 4294901760
        %v666 = vsub.f32 %v303, %v665
        %v667 = vand.u32 %v666, 4294901760
        %v668 = vsub.f32 %v666, %v667
        %v669 = vand.u32 %v668, 4294901760
        %670 = vmatmul.mubr.f32.gmra.mxu0 %v669
        %v671 = vpop.f32.mrf.mxu0
        %v672 = vadd.f32 %v215, %v671
        %v673 = vpop.f32.mrf.mxu0
        %674 = vmatprep.mubr.f32.mxu0 0.0
        %v675 = vand.u32 %v306, 4294901760
        %v676 = vsub.f32 %v306, %v675
        %v677 = vand.u32 %v676, 4294901760
        %v678 = vsub.f32 %v676, %v677
        %v679 = vand.u32 %v678, 4294901760
        %680 = vmatmul.mubr.f32.gmra.mxu0 %v679
        %v681 = vpop.f32.mrf.mxu0
        %v682 = vadd.f32 %v215, %v681
        %v683 = vpop.f32.mrf.mxu0
        %684 = vmatprep.mubr.f32.mxu0 0.0
        %v685 = vand.u32 %v309, 4294901760
        %v686 = vsub.f32 %v309, %v685
        %v687 = vand.u32 %v686, 4294901760
        %v688 = vsub.f32 %v686, %v687
        %v689 = vand.u32 %v688, 4294901760
        %690 = vmatmul.mubr.f32.gmra.mxu0 %v689
        %v691 = vpop.f32.mrf.mxu0
        %v692 = vadd.f32 %v215, %v691
        %v693 = vpop.f32.mrf.mxu0
        %694 = vmatprep.mubr.f32.mxu0 0.0
        %v695 = vand.u32 %v312, 4294901760
        %v696 = vsub.f32 %v312, %v695
        %v697 = vand.u32 %v696, 4294901760
        %v698 = vsub.f32 %v696, %v697
        %v699 = vand.u32 %v698, 4294901760
        %700 = vmatmul.mubr.f32.gmra.mxu0 %v699
        %v701 = vpop.f32.mrf.mxu0
        %v702 = vadd.f32 %v215, %v701
        %v703 = vpop.f32.mrf.mxu0
        %704 = vdwg.mxu0
        %705 = vmatprep.subr.mxu0 0.0
        %706 = vmatpush1.msra.mxu0 0.0
        %707 = vmatprep.subr.mxu0 0.0
        %708 = vmatpush1.msra.mxu0 0.0
        %709 = vmatprep.subr.mxu0 0.0
        %710 = vmatpush1.msra.mxu0 0.0
        %711 = vmatprep.subr.mxu0 0.0
        %712 = vmatpush1.msra.mxu0 0.0
        %713 = vmatprep.subr.mxu0 0.0
        %714 = vmatpush1.msra.mxu0 0.0
        %715 = vmatprep.subr.mxu0 0.0
        %716 = vmatpush1.msra.mxu0 0.0
        %717 = vmatprep.subr.mxu0 0.0
        %718 = vmatpush1.msra.mxu0 0.0
        %719 = vmatprep.subr.mxu0 0.0
        %720 = vmatpush1.msra.mxu0 0.0
        %721 = vmatprep.subr.mxu0 0.0
        %722 = vmatpush1.msra.mxu0 0.0
        %723 = vmatprep.subr.mxu0 0.0
        %724 = vmatpush1.msra.mxu0 0.0
        %725 = vmatprep.subr.mxu0 0.0
        %v726 = vand.u32 %v209, 4294901760
        %v727 = vsub.f32 %v209, %v726
        %v728 = vand.u32 %v727, 4294901760
        %v729 = vsub.f32 %v727, %v728
        %v730 = vand.u32 %v729, 4294901760
        %731 = vmatpush1.msra.mxu0 %v730
        %732 = vmatprep.subr.mxu0 0.0
        %v733 = vand.u32 %v208, 4294901760
        %v734 = vsub.f32 %v208, %v733
        %v735 = vand.u32 %v734, 4294901760
        %v736 = vsub.f32 %v734, %v735
        %v737 = vand.u32 %v736, 4294901760
        %738 = vmatpush1.msra.mxu0 %v737
        %739 = vmatprep.subr.mxu0 0.0
        %v740 = vand.u32 %v207, 4294901760
        %v741 = vsub.f32 %v207, %v740
        %v742 = vand.u32 %v741, 4294901760
        %v743 = vsub.f32 %v741, %v742
        %v744 = vand.u32 %v743, 4294901760
        %745 = vmatpush1.msra.mxu0 %v744
        %746 = vmatprep.subr.mxu0 0.0
        %v747 = vand.u32 %v206, 4294901760
        %v748 = vsub.f32 %v206, %v747
        %v749 = vand.u32 %v748, 4294901760
        %v750 = vsub.f32 %v748, %v749
        %v751 = vand.u32 %v750, 4294901760
        %752 = vmatpush1.msra.mxu0 %v751
        %753 = vmatprep.subr.mxu0 0.0
        %v754 = vand.u32 %v205, 4294901760
        %v755 = vsub.f32 %v205, %v754
        %v756 = vand.u32 %v755, 4294901760
        %v757 = vsub.f32 %v755, %v756
        %v758 = vand.u32 %v757, 4294901760
        %759 = vmatpush1.msra.mxu0 %v758
        %760 = vmatprep.subr.mxu0 0.0
        %v761 = vand.u32 %v204, 4294901760
        %v762 = vsub.f32 %v204, %v761
        %v763 = vand.u32 %v762, 4294901760
        %v764 = vsub.f32 %v762, %v763
        %v765 = vand.u32 %v764, 4294901760
        %766 = vmatpush1.msra.mxu0 %v765
        %767 = vmatprep.subr.mxu0 0.0
        %768 = vmatpush2.msra.mxu0 0.0
        %769 = vmatprep.subr.mxu0 0.0
        %770 = vmatpush2.msra.mxu0 0.0
        %771 = vmatprep.subr.mxu0 0.0
        %772 = vmatpush2.msra.mxu0 0.0
        %773 = vmatprep.subr.mxu0 0.0
        %774 = vmatpush2.msra.mxu0 0.0
        %775 = vmatprep.subr.mxu0 0.0
        %776 = vmatpush2.msra.mxu0 0.0
        %777 = vmatprep.subr.mxu0 0.0
        %778 = vmatpush2.msra.mxu0 0.0
        %779 = vmatprep.subr.mxu0 0.0
        %780 = vmatpush2.msra.mxu0 0.0
        %781 = vmatprep.subr.mxu0 0.0
        %782 = vmatpush2.msra.mxu0 0.0
        %783 = vmatprep.subr.mxu0 0.0
        %784 = vmatpush2.msra.mxu0 0.0
        %785 = vmatprep.subr.mxu0 0.0
        %786 = vmatpush2.msra.mxu0 0.0
        %787 = vmatprep.subr.mxu0 0.0
        %788 = vmatpush2.msra.mxu0 0.0
        %789 = vmatprep.subr.mxu0 0.0
        %790 = vmatpush2.msra.mxu0 0.0
        %791 = vmatprep.subr.mxu0 0.0
        %792 = vmatpush2.msra.mxu0 0.0
        %793 = vmatprep.subr.mxu0 0.0
        %794 = vmatpush2.msra.mxu0 0.0
        %795 = vmatprep.subr.mxu0 0.0
        %796 = vmatpush2.msra.mxu0 0.0
        %797 = vmatprep.subr.mxu0 0.0
        %798 = vmatpush2.msra.mxu0 0.0
        %799 = vmatprep.mubr.f32.mxu0 0.0
        %v800 = vand.u32 %v219, 4294901760
        %801 = vmatmul.mubr.f32.gmra.mxu0 %v800
        %v802 = vpop.f32.mrf.mxu0
        %v803 = vadd.f32 %v392, %v802
        %v804 = vpop.f32.mrf.mxu0
        %805 = vmatprep.mubr.f32.mxu0 0.0
        %v806 = vand.u32 %v222, 4294901760
        %807 = vmatmul.mubr.f32.gmra.mxu0 %v806
        %v808 = vpop.f32.mrf.mxu0
        %v809 = vadd.f32 %v402, %v808
        %v810 = vpop.f32.mrf.mxu0
        %811 = vmatprep.mubr.f32.mxu0 0.0
        %v812 = vand.u32 %v225, 4294901760
        %813 = vmatmul.mubr.f32.gmra.mxu0 %v812
        %v814 = vpop.f32.mrf.mxu0
        %v815 = vadd.f32 %v412, %v814
        %v816 = vpop.f32.mrf.mxu0
        %817 = vmatprep.mubr.f32.mxu0 0.0
        %v818 = vand.u32 %v228, 4294901760
        %819 = vmatmul.mubr.f32.gmra.mxu0 %v818
        %v820 = vpop.f32.mrf.mxu0
        %v821 = vadd.f32 %v422, %v820
        %v822 = vpop.f32.mrf.mxu0
        %823 = vmatprep.mubr.f32.mxu0 0.0
        %v824 = vand.u32 %v231, 4294901760
        %825 = vmatmul.mubr.f32.gmra.mxu0 %v824
        %v826 = vpop.f32.mrf.mxu0
        %v827 = vadd.f32 %v432, %v826
        %v828 = vpop.f32.mrf.mxu0
        %829 = vmatprep.mubr.f32.mxu0 0.0
        %v830 = vand.u32 %v234, 4294901760
        %831 = vmatmul.mubr.f32.gmra.mxu0 %v830
        %v832 = vpop.f32.mrf.mxu0
        %v833 = vadd.f32 %v442, %v832
        %v834 = vpop.f32.mrf.mxu0
        %835 = vmatprep.mubr.f32.mxu0 0.0
        %v836 = vand.u32 %v237, 4294901760
        %837 = vmatmul.mubr.f32.gmra.mxu0 %v836
        %v838 = vpop.f32.mrf.mxu0
        %v839 = vadd.f32 %v452, %v838
        %v840 = vpop.f32.mrf.mxu0
        %841 = vmatprep.mubr.f32.mxu0 0.0
        %v842 = vand.u32 %v240, 4294901760
        %843 = vmatmul.mubr.f32.gmra.mxu0 %v842
        %v844 = vpop.f32.mrf.mxu0
        %v845 = vadd.f32 %v462, %v844
        %v846 = vpop.f32.mrf.mxu0
        %847 = vmatprep.mubr.f32.mxu0 0.0
        %v848 = vand.u32 %v243, 4294901760
        %849 = vmatmul.mubr.f32.gmra.mxu0 %v848
        %v850 = vpop.f32.mrf.mxu0
        %v851 = vadd.f32 %v472, %v850
        %v852 = vpop.f32.mrf.mxu0
        %853 = vmatprep.mubr.f32.mxu0 0.0
        %v854 = vand.u32 %v246, 4294901760
        %855 = vmatmul.mubr.f32.gmra.mxu0 %v854
        %v856 = vpop.f32.mrf.mxu0
        %v857 = vadd.f32 %v482, %v856
        %v858 = vpop.f32.mrf.mxu0
        %859 = vmatprep.mubr.f32.mxu0 0.0
        %v860 = vand.u32 %v249, 4294901760
        %861 = vmatmul.mubr.f32.gmra.mxu0 %v860
        %v862 = vpop.f32.mrf.mxu0
        %v863 = vadd.f32 %v492, %v862
        %v864 = vpop.f32.mrf.mxu0
        %865 = vmatprep.mubr.f32.mxu0 0.0
        %v866 = vand.u32 %v252, 4294901760
        %867 = vmatmul.mubr.f32.gmra.mxu0 %v866
        %v868 = vpop.f32.mrf.mxu0
        %v869 = vadd.f32 %v502, %v868
        %v870 = vpop.f32.mrf.mxu0
        %871 = vmatprep.mubr.f32.mxu0 0.0
        %v872 = vand.u32 %v255, 4294901760
        %873 = vmatmul.mubr.f32.gmra.mxu0 %v872
        %v874 = vpop.f32.mrf.mxu0
        %v875 = vadd.f32 %v512, %v874
        %v876 = vpop.f32.mrf.mxu0
        %877 = vmatprep.mubr.f32.mxu0 0.0
        %v878 = vand.u32 %v258, 4294901760
        %879 = vmatmul.mubr.f32.gmra.mxu0 %v878
        %v880 = vpop.f32.mrf.mxu0
        %v881 = vadd.f32 %v522, %v880
        %v882 = vpop.f32.mrf.mxu0
        %883 = vmatprep.mubr.f32.mxu0 0.0
        %v884 = vand.u32 %v261, 4294901760
        %885 = vmatmul.mubr.f32.gmra.mxu0 %v884
        %v886 = vpop.f32.mrf.mxu0
        %v887 = vadd.f32 %v532, %v886
        %v888 = vpop.f32.mrf.mxu0
        %889 = vmatprep.mubr.f32.mxu0 0.0
        %v890 = vand.u32 %v264, 4294901760
        %891 = vmatmul.mubr.f32.gmra.mxu0 %v890
        %v892 = vpop.f32.mrf.mxu0
        %v893 = vadd.f32 %v542, %v892
        %v894 = vpop.f32.mrf.mxu0
        %895 = vmatprep.mubr.f32.mxu0 0.0
        %v896 = vand.u32 %v267, 4294901760
        %897 = vmatmul.mubr.f32.gmra.mxu0 %v896
        %v898 = vpop.f32.mrf.mxu0
        %v899 = vadd.f32 %v552, %v898
        %v900 = vpop.f32.mrf.mxu0
        %901 = vmatprep.mubr.f32.mxu0 0.0
        %v902 = vand.u32 %v270, 4294901760
        %903 = vmatmul.mubr.f32.gmra.mxu0 %v902
        %v904 = vpop.f32.mrf.mxu0
        %v905 = vadd.f32 %v562, %v904
        %v906 = vpop.f32.mrf.mxu0
        %907 = vmatprep.mubr.f32.mxu0 0.0
        %v908 = vand.u32 %v273, 4294901760
        %909 = vmatmul.mubr.f32.gmra.mxu0 %v908
        %v910 = vpop.f32.mrf.mxu0
        %v911 = vadd.f32 %v572, %v910
        %v912 = vpop.f32.mrf.mxu0
        %913 = vmatprep.mubr.f32.mxu0 0.0
        %v914 = vand.u32 %v276, 4294901760
        %915 = vmatmul.mubr.f32.gmra.mxu0 %v914
        %v916 = vpop.f32.mrf.mxu0
        %v917 = vadd.f32 %v582, %v916
        %v918 = vpop.f32.mrf.mxu0
        %919 = vmatprep.mubr.f32.mxu0 0.0
        %v920 = vand.u32 %v279, 4294901760
        %921 = vmatmul.mubr.f32.gmra.mxu0 %v920
        %v922 = vpop.f32.mrf.mxu0
        %v923 = vadd.f32 %v592, %v922
        %v924 = vpop.f32.mrf.mxu0
        %925 = vmatprep.mubr.f32.mxu0 0.0
        %v926 = vand.u32 %v282, 4294901760
        %927 = vmatmul.mubr.f32.gmra.mxu0 %v926
        %v928 = vpop.f32.mrf.mxu0
        %v929 = vadd.f32 %v602, %v928
        %v930 = vpop.f32.mrf.mxu0
        %931 = vmatprep.mubr.f32.mxu0 0.0
        %v932 = vand.u32 %v285, 4294901760
        %933 = vmatmul.mubr.f32.gmra.mxu0 %v932
        %v934 = vpop.f32.mrf.mxu0
        %v935 = vadd.f32 %v612, %v934
        %v936 = vpop.f32.mrf.mxu0
        %937 = vmatprep.mubr.f32.mxu0 0.0
        %v938 = vand.u32 %v288, 4294901760
        %939 = vmatmul.mubr.f32.gmra.mxu0 %v938
        %v940 = vpop.f32.mrf.mxu0
        %v941 = vadd.f32 %v622, %v940
        %v942 = vpop.f32.mrf.mxu0
        %943 = vmatprep.mubr.f32.mxu0 0.0
        %v944 = vand.u32 %v291, 4294901760
        %945 = vmatmul.mubr.f32.gmra.mxu0 %v944
        %v946 = vpop.f32.mrf.mxu0
        %v947 = vadd.f32 %v632, %v946
        %v948 = vpop.f32.mrf.mxu0
        %949 = vmatprep.mubr.f32.mxu0 0.0
        %v950 = vand.u32 %v294, 4294901760
        %951 = vmatmul.mubr.f32.gmra.mxu0 %v950
        %v952 = vpop.f32.mrf.mxu0
        %v953 = vadd.f32 %v642, %v952
        %v954 = vpop.f32.mrf.mxu0
        %955 = vmatprep.mubr.f32.mxu0 0.0
        %v956 = vand.u32 %v297, 4294901760
        %957 = vmatmul.mubr.f32.gmra.mxu0 %v956
        %v958 = vpop.f32.mrf.mxu0
        %v959 = vadd.f32 %v652, %v958
        %v960 = vpop.f32.mrf.mxu0
        %961 = vmatprep.mubr.f32.mxu0 0.0
        %v962 = vand.u32 %v300, 4294901760
        %963 = vmatmul.mubr.f32.gmra.mxu0 %v962
        %v964 = vpop.f32.mrf.mxu0
        %v965 = vadd.f32 %v662, %v964
        %v966 = vpop.f32.mrf.mxu0
        %967 = vmatprep.mubr.f32.mxu0 0.0
        %v968 = vand.u32 %v303, 4294901760
        %969 = vmatmul.mubr.f32.gmra.mxu0 %v968
        %v970 = vpop.f32.mrf.mxu0
        %v971 = vadd.f32 %v672, %v970
        %v972 = vpop.f32.mrf.mxu0
        %973 = vmatprep.mubr.f32.mxu0 0.0
        %v974 = vand.u32 %v306, 4294901760
        %975 = vmatmul.mubr.f32.gmra.mxu0 %v974
        %v976 = vpop.f32.mrf.mxu0
        %v977 = vadd.f32 %v682, %v976
        %v978 = vpop.f32.mrf.mxu0
        %979 = vmatprep.mubr.f32.mxu0 0.0
        %v980 = vand.u32 %v309, 4294901760
        %981 = vmatmul.mubr.f32.gmra.mxu0 %v980
        %v982 = vpop.f32.mrf.mxu0
        %v983 = vadd.f32 %v692, %v982
        %v984 = vpop.f32.mrf.mxu0
        %985 = vmatprep.mubr.f32.mxu0 0.0
        %v986 = vand.u32 %v312, 4294901760
        %987 = vmatmul.mubr.f32.gmra.mxu0 %v986
        %v988 = vpop.f32.mrf.mxu0
        %v989 = vadd.f32 %v702, %v988
        %v990 = vpop.f32.mrf.mxu0
        %991 = vdwg.mxu0
        %992 = vmatprep.subr.mxu0 0.0
        %993 = vmatpush1.msra.mxu0 0.0
        %994 = vmatprep.subr.mxu0 0.0
        %995 = vmatpush1.msra.mxu0 0.0
        %996 = vmatprep.subr.mxu0 0.0
        %997 = vmatpush1.msra.mxu0 0.0
        %998 = vmatprep.subr.mxu0 0.0
        %999 = vmatpush1.msra.mxu0 0.0
        %1000 = vmatprep.subr.mxu0 0.0
        %1001 = vmatpush1.msra.mxu0 0.0
        %1002 = vmatprep.subr.mxu0 0.0
        %1003 = vmatpush1.msra.mxu0 0.0
        %1004 = vmatprep.subr.mxu0 0.0
        %1005 = vmatpush1.msra.mxu0 0.0
        %1006 = vmatprep.subr.mxu0 0.0
        %1007 = vmatpush1.msra.mxu0 0.0
        %1008 = vmatprep.subr.mxu0 0.0
        %1009 = vmatpush1.msra.mxu0 0.0
        %1010 = vmatprep.subr.mxu0 0.0
        %1011 = vmatpush1.msra.mxu0 0.0
        %1012 = vmatprep.subr.mxu0 0.0
        %v1013 = vand.u32 %v209, 4294901760
        %v1014 = vsub.f32 %v209, %v1013
        %1015 = vmatpush1.msra.mxu0 %v1014
        %1016 = vmatprep.subr.mxu0 0.0
        %v1017 = vand.u32 %v208, 4294901760
        %v1018 = vsub.f32 %v208, %v1017
        %1019 = vmatpush1.msra.mxu0 %v1018
        %1020 = vmatprep.subr.mxu0 0.0
        %v1021 = vand.u32 %v207, 4294901760
        %v1022 = vsub.f32 %v207, %v1021
        %1023 = vmatpush1.msra.mxu0 %v1022
        %1024 = vmatprep.subr.mxu0 0.0
        %v1025 = vand.u32 %v206, 4294901760
        %v1026 = vsub.f32 %v206, %v1025
        %1027 = vmatpush1.msra.mxu0 %v1026
        %1028 = vmatprep.subr.mxu0 0.0
        %v1029 = vand.u32 %v205, 4294901760
        %v1030 = vsub.f32 %v205, %v1029
        %1031 = vmatpush1.msra.mxu0 %v1030
        %1032 = vmatprep.subr.mxu0 0.0
        %v1033 = vand.u32 %v204, 4294901760
        %v1034 = vsub.f32 %v204, %v1033
        %1035 = vmatpush1.msra.mxu0 %v1034
        %1036 = vmatprep.subr.mxu0 0.0
        %1037 = vmatpush2.msra.mxu0 0.0
        %1038 = vmatprep.subr.mxu0 0.0
        %1039 = vmatpush2.msra.mxu0 0.0
        %1040 = vmatprep.subr.mxu0 0.0
        %1041 = vmatpush2.msra.mxu0 0.0
        %1042 = vmatprep.subr.mxu0 0.0
        %1043 = vmatpush2.msra.mxu0 0.0
        %1044 = vmatprep.subr.mxu0 0.0
        %1045 = vmatpush2.msra.mxu0 0.0
        %1046 = vmatprep.subr.mxu0 0.0
        %1047 = vmatpush2.msra.mxu0 0.0
        %1048 = vmatprep.subr.mxu0 0.0
        %1049 = vmatpush2.msra.mxu0 0.0
        %1050 = vmatprep.subr.mxu0 0.0
        %1051 = vmatpush2.msra.mxu0 0.0
        %1052 = vmatprep.subr.mxu0 0.0
        %1053 = vmatpush2.msra.mxu0 0.0
        %1054 = vmatprep.subr.mxu0 0.0
        %1055 = vmatpush2.msra.mxu0 0.0
        %1056 = vmatprep.subr.mxu0 0.0
        %1057 = vmatpush2.msra.mxu0 0.0
        %1058 = vmatprep.subr.mxu0 0.0
        %1059 = vmatpush2.msra.mxu0 0.0
        %1060 = vmatprep.subr.mxu0 0.0
        %1061 = vmatpush2.msra.mxu0 0.0
        %1062 = vmatprep.subr.mxu0 0.0
        %1063 = vmatpush2.msra.mxu0 0.0
        %1064 = vmatprep.subr.mxu0 0.0
        %1065 = vmatpush2.msra.mxu0 0.0
        %1066 = vmatprep.subr.mxu0 0.0
        %1067 = vmatpush2.msra.mxu0 0.0
        %1068 = vmatprep.mubr.f32.mxu0 0.0
        %v1069 = vand.u32 %v219, 4294901760
        %v1070 = vsub.f32 %v219, %v1069
        %1071 = vmatmul.mubr.f32.gmra.mxu0 %v1070
        %v1072 = vpop.f32.mrf.mxu0
        %v1073 = vadd.f32 %v803, %v1072
        %v1074 = vpop.f32.mrf.mxu0
        %1075 = vmatprep.mubr.f32.mxu0 0.0
        %v1076 = vand.u32 %v222, 4294901760
        %v1077 = vsub.f32 %v222, %v1076
        %1078 = vmatmul.mubr.f32.gmra.mxu0 %v1077
        %v1079 = vpop.f32.mrf.mxu0
        %v1080 = vadd.f32 %v809, %v1079
        %v1081 = vpop.f32.mrf.mxu0
        %1082 = vmatprep.mubr.f32.mxu0 0.0
        %v1083 = vand.u32 %v225, 4294901760
        %v1084 = vsub.f32 %v225, %v1083
        %1085 = vmatmul.mubr.f32.gmra.mxu0 %v1084
        %v1086 = vpop.f32.mrf.mxu0
        %v1087 = vadd.f32 %v815, %v1086
        %v1088 = vpop.f32.mrf.mxu0
        %1089 = vmatprep.mubr.f32.mxu0 0.0
        %v1090 = vand.u32 %v228, 4294901760
        %v1091 = vsub.f32 %v228, %v1090
        %1092 = vmatmul.mubr.f32.gmra.mxu0 %v1091
        %v1093 = vpop.f32.mrf.mxu0
        %v1094 = vadd.f32 %v821, %v1093
        %v1095 = vpop.f32.mrf.mxu0
        %1096 = vmatprep.mubr.f32.mxu0 0.0
        %v1097 = vand.u32 %v231, 4294901760
        %v1098 = vsub.f32 %v231, %v1097
        %1099 = vmatmul.mubr.f32.gmra.mxu0 %v1098
        %v1100 = vpop.f32.mrf.mxu0
        %v1101 = vadd.f32 %v827, %v1100
        %v1102 = vpop.f32.mrf.mxu0
        %1103 = vmatprep.mubr.f32.mxu0 0.0
        %v1104 = vand.u32 %v234, 4294901760
        %v1105 = vsub.f32 %v234, %v1104
        %1106 = vmatmul.mubr.f32.gmra.mxu0 %v1105
        %v1107 = vpop.f32.mrf.mxu0
        %v1108 = vadd.f32 %v833, %v1107
        %v1109 = vpop.f32.mrf.mxu0
        %1110 = vmatprep.mubr.f32.mxu0 0.0
        %v1111 = vand.u32 %v237, 4294901760
        %v1112 = vsub.f32 %v237, %v1111
        %1113 = vmatmul.mubr.f32.gmra.mxu0 %v1112
        %v1114 = vpop.f32.mrf.mxu0
        %v1115 = vadd.f32 %v839, %v1114
        %v1116 = vpop.f32.mrf.mxu0
        %1117 = vmatprep.mubr.f32.mxu0 0.0
        %v1118 = vand.u32 %v240, 4294901760
        %v1119 = vsub.f32 %v240, %v1118
        %1120 = vmatmul.mubr.f32.gmra.mxu0 %v1119
        %v1121 = vpop.f32.mrf.mxu0
        %v1122 = vadd.f32 %v845, %v1121
        %v1123 = vpop.f32.mrf.mxu0
        %1124 = vmatprep.mubr.f32.mxu0 0.0
        %v1125 = vand.u32 %v243, 4294901760
        %v1126 = vsub.f32 %v243, %v1125
        %1127 = vmatmul.mubr.f32.gmra.mxu0 %v1126
        %v1128 = vpop.f32.mrf.mxu0
        %v1129 = vadd.f32 %v851, %v1128
        %v1130 = vpop.f32.mrf.mxu0
        %1131 = vmatprep.mubr.f32.mxu0 0.0
        %v1132 = vand.u32 %v246, 4294901760
        %v1133 = vsub.f32 %v246, %v1132
        %1134 = vmatmul.mubr.f32.gmra.mxu0 %v1133
        %v1135 = vpop.f32.mrf.mxu0
        %v1136 = vadd.f32 %v857, %v1135
        %v1137 = vpop.f32.mrf.mxu0
        %1138 = vmatprep.mubr.f32.mxu0 0.0
        %v1139 = vand.u32 %v249, 4294901760
        %v1140 = vsub.f32 %v249, %v1139
        %1141 = vmatmul.mubr.f32.gmra.mxu0 %v1140
        %v1142 = vpop.f32.mrf.mxu0
        %v1143 = vadd.f32 %v863, %v1142
        %v1144 = vpop.f32.mrf.mxu0
        %1145 = vmatprep.mubr.f32.mxu0 0.0
        %v1146 = vand.u32 %v252, 4294901760
        %v1147 = vsub.f32 %v252, %v1146
        %1148 = vmatmul.mubr.f32.gmra.mxu0 %v1147
        %v1149 = vpop.f32.mrf.mxu0
        %v1150 = vadd.f32 %v869, %v1149
        %v1151 = vpop.f32.mrf.mxu0
        %1152 = vmatprep.mubr.f32.mxu0 0.0
        %v1153 = vand.u32 %v255, 4294901760
        %v1154 = vsub.f32 %v255, %v1153
        %1155 = vmatmul.mubr.f32.gmra.mxu0 %v1154
        %v1156 = vpop.f32.mrf.mxu0
        %v1157 = vadd.f32 %v875, %v1156
        %v1158 = vpop.f32.mrf.mxu0
        %1159 = vmatprep.mubr.f32.mxu0 0.0
        %v1160 = vand.u32 %v258, 4294901760
        %v1161 = vsub.f32 %v258, %v1160
        %1162 = vmatmul.mubr.f32.gmra.mxu0 %v1161
        %v1163 = vpop.f32.mrf.mxu0
        %v1164 = vadd.f32 %v881, %v1163
        %v1165 = vpop.f32.mrf.mxu0
        %1166 = vmatprep.mubr.f32.mxu0 0.0
        %v1167 = vand.u32 %v261, 4294901760
        %v1168 = vsub.f32 %v261, %v1167
        %1169 = vmatmul.mubr.f32.gmra.mxu0 %v1168
        %v1170 = vpop.f32.mrf.mxu0
        %v1171 = vadd.f32 %v887, %v1170
        %v1172 = vpop.f32.mrf.mxu0
        %1173 = vmatprep.mubr.f32.mxu0 0.0
        %v1174 = vand.u32 %v264, 4294901760
        %v1175 = vsub.f32 %v264, %v1174
        %1176 = vmatmul.mubr.f32.gmra.mxu0 %v1175
        %v1177 = vpop.f32.mrf.mxu0
        %v1178 = vadd.f32 %v893, %v1177
        %v1179 = vpop.f32.mrf.mxu0
        %1180 = vmatprep.mubr.f32.mxu0 0.0
        %v1181 = vand.u32 %v267, 4294901760
        %v1182 = vsub.f32 %v267, %v1181
        %1183 = vmatmul.mubr.f32.gmra.mxu0 %v1182
        %v1184 = vpop.f32.mrf.mxu0
        %v1185 = vadd.f32 %v899, %v1184
        %v1186 = vpop.f32.mrf.mxu0
        %1187 = vmatprep.mubr.f32.mxu0 0.0
        %v1188 = vand.u32 %v270, 4294901760
        %v1189 = vsub.f32 %v270, %v1188
        %1190 = vmatmul.mubr.f32.gmra.mxu0 %v1189
        %v1191 = vpop.f32.mrf.mxu0
        %v1192 = vadd.f32 %v905, %v1191
        %v1193 = vpop.f32.mrf.mxu0
        %1194 = vmatprep.mubr.f32.mxu0 0.0
        %v1195 = vand.u32 %v273, 4294901760
        %v1196 = vsub.f32 %v273, %v1195
        %1197 = vmatmul.mubr.f32.gmra.mxu0 %v1196
        %v1198 = vpop.f32.mrf.mxu0
        %v1199 = vadd.f32 %v911, %v1198
        %v1200 = vpop.f32.mrf.mxu0
        %1201 = vmatprep.mubr.f32.mxu0 0.0
        %v1202 = vand.u32 %v276, 4294901760
        %v1203 = vsub.f32 %v276, %v1202
        %1204 = vmatmul.mubr.f32.gmra.mxu0 %v1203
        %v1205 = vpop.f32.mrf.mxu0
        %v1206 = vadd.f32 %v917, %v1205
        %v1207 = vpop.f32.mrf.mxu0
        %1208 = vmatprep.mubr.f32.mxu0 0.0
        %v1209 = vand.u32 %v279, 4294901760
        %v1210 = vsub.f32 %v279, %v1209
        %1211 = vmatmul.mubr.f32.gmra.mxu0 %v1210
        %v1212 = vpop.f32.mrf.mxu0
        %v1213 = vadd.f32 %v923, %v1212
        %v1214 = vpop.f32.mrf.mxu0
        %1215 = vmatprep.mubr.f32.mxu0 0.0
        %v1216 = vand.u32 %v282, 4294901760
        %v1217 = vsub.f32 %v282, %v1216
        %1218 = vmatmul.mubr.f32.gmra.mxu0 %v1217
        %v1219 = vpop.f32.mrf.mxu0
        %v1220 = vadd.f32 %v929, %v1219
        %v1221 = vpop.f32.mrf.mxu0
        %1222 = vmatprep.mubr.f32.mxu0 0.0
        %v1223 = vand.u32 %v285, 4294901760
        %v1224 = vsub.f32 %v285, %v1223
        %1225 = vmatmul.mubr.f32.gmra.mxu0 %v1224
        %v1226 = vpop.f32.mrf.mxu0
        %v1227 = vadd.f32 %v935, %v1226
        %v1228 = vpop.f32.mrf.mxu0
        %1229 = vmatprep.mubr.f32.mxu0 0.0
        %v1230 = vand.u32 %v288, 4294901760
        %v1231 = vsub.f32 %v288, %v1230
        %1232 = vmatmul.mubr.f32.gmra.mxu0 %v1231
        %v1233 = vpop.f32.mrf.mxu0
        %v1234 = vadd.f32 %v941, %v1233
        %v1235 = vpop.f32.mrf.mxu0
        %1236 = vmatprep.mubr.f32.mxu0 0.0
        %v1237 = vand.u32 %v291, 4294901760
        %v1238 = vsub.f32 %v291, %v1237
        %1239 = vmatmul.mubr.f32.gmra.mxu0 %v1238
        %v1240 = vpop.f32.mrf.mxu0
        %v1241 = vadd.f32 %v947, %v1240
        %v1242 = vpop.f32.mrf.mxu0
        %1243 = vmatprep.mubr.f32.mxu0 0.0
        %v1244 = vand.u32 %v294, 4294901760
        %v1245 = vsub.f32 %v294, %v1244
        %1246 = vmatmul.mubr.f32.gmra.mxu0 %v1245
        %v1247 = vpop.f32.mrf.mxu0
        %v1248 = vadd.f32 %v953, %v1247
        %v1249 = vpop.f32.mrf.mxu0
        %1250 = vmatprep.mubr.f32.mxu0 0.0
        %v1251 = vand.u32 %v297, 4294901760
        %v1252 = vsub.f32 %v297, %v1251
        %1253 = vmatmul.mubr.f32.gmra.mxu0 %v1252
        %v1254 = vpop.f32.mrf.mxu0
        %v1255 = vadd.f32 %v959, %v1254
        %v1256 = vpop.f32.mrf.mxu0
        %1257 = vmatprep.mubr.f32.mxu0 0.0
        %v1258 = vand.u32 %v300, 4294901760
        %v1259 = vsub.f32 %v300, %v1258
        %1260 = vmatmul.mubr.f32.gmra.mxu0 %v1259
        %v1261 = vpop.f32.mrf.mxu0
        %v1262 = vadd.f32 %v965, %v1261
        %v1263 = vpop.f32.mrf.mxu0
        %1264 = vmatprep.mubr.f32.mxu0 0.0
        %v1265 = vand.u32 %v303, 4294901760
        %v1266 = vsub.f32 %v303, %v1265
        %1267 = vmatmul.mubr.f32.gmra.mxu0 %v1266
        %v1268 = vpop.f32.mrf.mxu0
        %v1269 = vadd.f32 %v971, %v1268
        %v1270 = vpop.f32.mrf.mxu0
        %1271 = vmatprep.mubr.f32.mxu0 0.0
        %v1272 = vand.u32 %v306, 4294901760
        %v1273 = vsub.f32 %v306, %v1272
        %1274 = vmatmul.mubr.f32.gmra.mxu0 %v1273
        %v1275 = vpop.f32.mrf.mxu0
        %v1276 = vadd.f32 %v977, %v1275
        %v1277 = vpop.f32.mrf.mxu0
        %1278 = vmatprep.mubr.f32.mxu0 0.0
        %v1279 = vand.u32 %v309, 4294901760
        %v1280 = vsub.f32 %v309, %v1279
        %1281 = vmatmul.mubr.f32.gmra.mxu0 %v1280
        %v1282 = vpop.f32.mrf.mxu0
        %v1283 = vadd.f32 %v983, %v1282
        %v1284 = vpop.f32.mrf.mxu0
        %1285 = vmatprep.mubr.f32.mxu0 0.0
        %v1286 = vand.u32 %v312, 4294901760
        %v1287 = vsub.f32 %v312, %v1286
        %1288 = vmatmul.mubr.f32.gmra.mxu0 %v1287
        %v1289 = vpop.f32.mrf.mxu0
        %v1290 = vadd.f32 %v989, %v1289
        %v1291 = vpop.f32.mrf.mxu0
        %1292 = vdwg.mxu0
        %1293 = vmatprep.subr.mxu0 0.0
        %1294 = vmatpush1.msra.mxu0 0.0
        %1295 = vmatprep.subr.mxu0 0.0
        %1296 = vmatpush1.msra.mxu0 0.0
        %1297 = vmatprep.subr.mxu0 0.0
        %1298 = vmatpush1.msra.mxu0 0.0
        %1299 = vmatprep.subr.mxu0 0.0
        %1300 = vmatpush1.msra.mxu0 0.0
        %1301 = vmatprep.subr.mxu0 0.0
        %1302 = vmatpush1.msra.mxu0 0.0
        %1303 = vmatprep.subr.mxu0 0.0
        %1304 = vmatpush1.msra.mxu0 0.0
        %1305 = vmatprep.subr.mxu0 0.0
        %1306 = vmatpush1.msra.mxu0 0.0
        %1307 = vmatprep.subr.mxu0 0.0
        %1308 = vmatpush1.msra.mxu0 0.0
        %1309 = vmatprep.subr.mxu0 0.0
        %1310 = vmatpush1.msra.mxu0 0.0
        %1311 = vmatprep.subr.mxu0 0.0
        %1312 = vmatpush1.msra.mxu0 0.0
        %1313 = vmatprep.subr.mxu0 0.0
        %v1314 = vand.u32 %v209, 4294901760
        %1315 = vmatpush1.msra.mxu0 %v1314
        %1316 = vmatprep.subr.mxu0 0.0
        %v1317 = vand.u32 %v208, 4294901760
        %1318 = vmatpush1.msra.mxu0 %v1317
        %1319 = vmatprep.subr.mxu0 0.0
        %v1320 = vand.u32 %v207, 4294901760
        %1321 = vmatpush1.msra.mxu0 %v1320
        %1322 = vmatprep.subr.mxu0 0.0
        %v1323 = vand.u32 %v206, 4294901760
        %1324 = vmatpush1.msra.mxu0 %v1323
        %1325 = vmatprep.subr.mxu0 0.0
        %v1326 = vand.u32 %v205, 4294901760
        %1327 = vmatpush1.msra.mxu0 %v1326
        %1328 = vmatprep.subr.mxu0 0.0
        %v1329 = vand.u32 %v204, 4294901760
        %1330 = vmatpush1.msra.mxu0 %v1329
        %1331 = vmatprep.subr.mxu0 0.0
        %1332 = vmatpush2.msra.mxu0 0.0
        %1333 = vmatprep.subr.mxu0 0.0
        %1334 = vmatpush2.msra.mxu0 0.0
        %1335 = vmatprep.subr.mxu0 0.0
        %1336 = vmatpush2.msra.mxu0 0.0
        %1337 = vmatprep.subr.mxu0 0.0
        %1338 = vmatpush2.msra.mxu0 0.0
        %1339 = vmatprep.subr.mxu0 0.0
        %1340 = vmatpush2.msra.mxu0 0.0
        %1341 = vmatprep.subr.mxu0 0.0
        %1342 = vmatpush2.msra.mxu0 0.0
        %1343 = vmatprep.subr.mxu0 0.0
        %1344 = vmatpush2.msra.mxu0 0.0
        %1345 = vmatprep.subr.mxu0 0.0
        %1346 = vmatpush2.msra.mxu0 0.0
        %1347 = vmatprep.subr.mxu0 0.0
        %1348 = vmatpush2.msra.mxu0 0.0
        %1349 = vmatprep.subr.mxu0 0.0
        %1350 = vmatpush2.msra.mxu0 0.0
        %1351 = vmatprep.subr.mxu0 0.0
        %1352 = vmatpush2.msra.mxu0 0.0
        %1353 = vmatprep.subr.mxu0 0.0
        %1354 = vmatpush2.msra.mxu0 0.0
        %1355 = vmatprep.subr.mxu0 0.0
        %1356 = vmatpush2.msra.mxu0 0.0
        %1357 = vmatprep.subr.mxu0 0.0
        %1358 = vmatpush2.msra.mxu0 0.0
        %1359 = vmatprep.subr.mxu0 0.0
        %1360 = vmatpush2.msra.mxu0 0.0
        %1361 = vmatprep.subr.mxu0 0.0
        %1362 = vmatpush2.msra.mxu0 0.0
        %1363 = vmatprep.mubr.f32.mxu0 0.0
        %v1364 = vand.u32 %v219, 4294901760
        %v1365 = vsub.f32 %v219, %v1364
        %v1366 = vand.u32 %v1365, 4294901760
        %1367 = vmatmul.mubr.f32.gmra.mxu0 %v1366
        %v1368 = vpop.f32.mrf.mxu0
        %v1369 = vadd.f32 %v1073, %v1368
        %v1370 = vpop.f32.mrf.mxu0
        %1371 = vmatprep.mubr.f32.mxu0 0.0
        %v1372 = vand.u32 %v222, 4294901760
        %v1373 = vsub.f32 %v222, %v1372
        %v1374 = vand.u32 %v1373, 4294901760
        %1375 = vmatmul.mubr.f32.gmra.mxu0 %v1374
        %v1376 = vpop.f32.mrf.mxu0
        %v1377 = vadd.f32 %v1080, %v1376
        %v1378 = vpop.f32.mrf.mxu0
        %1379 = vmatprep.mubr.f32.mxu0 0.0
        %v1380 = vand.u32 %v225, 4294901760
        %v1381 = vsub.f32 %v225, %v1380
        %v1382 = vand.u32 %v1381, 4294901760
        %1383 = vmatmul.mubr.f32.gmra.mxu0 %v1382
        %v1384 = vpop.f32.mrf.mxu0
        %v1385 = vadd.f32 %v1087, %v1384
        %v1386 = vpop.f32.mrf.mxu0
        %1387 = vmatprep.mubr.f32.mxu0 0.0
        %v1388 = vand.u32 %v228, 4294901760
        %v1389 = vsub.f32 %v228, %v1388
        %v1390 = vand.u32 %v1389, 4294901760
        %1391 = vmatmul.mubr.f32.gmra.mxu0 %v1390
        %v1392 = vpop.f32.mrf.mxu0
        %v1393 = vadd.f32 %v1094, %v1392
        %v1394 = vpop.f32.mrf.mxu0
        %1395 = vmatprep.mubr.f32.mxu0 0.0
        %v1396 = vand.u32 %v231, 4294901760
        %v1397 = vsub.f32 %v231, %v1396
        %v1398 = vand.u32 %v1397, 4294901760
        %1399 = vmatmul.mubr.f32.gmra.mxu0 %v1398
        %v1400 = vpop.f32.mrf.mxu0
        %v1401 = vadd.f32 %v1101, %v1400
        %v1402 = vpop.f32.mrf.mxu0
        %1403 = vmatprep.mubr.f32.mxu0 0.0
        %v1404 = vand.u32 %v234, 4294901760
        %v1405 = vsub.f32 %v234, %v1404
        %v1406 = vand.u32 %v1405, 4294901760
        %1407 = vmatmul.mubr.f32.gmra.mxu0 %v1406
        %v1408 = vpop.f32.mrf.mxu0
        %v1409 = vadd.f32 %v1108, %v1408
        %v1410 = vpop.f32.mrf.mxu0
        %1411 = vmatprep.mubr.f32.mxu0 0.0
        %v1412 = vand.u32 %v237, 4294901760
        %v1413 = vsub.f32 %v237, %v1412
        %v1414 = vand.u32 %v1413, 4294901760
        %1415 = vmatmul.mubr.f32.gmra.mxu0 %v1414
        %v1416 = vpop.f32.mrf.mxu0
        %v1417 = vadd.f32 %v1115, %v1416
        %v1418 = vpop.f32.mrf.mxu0
        %1419 = vmatprep.mubr.f32.mxu0 0.0
        %v1420 = vand.u32 %v240, 4294901760
        %v1421 = vsub.f32 %v240, %v1420
        %v1422 = vand.u32 %v1421, 4294901760
        %1423 = vmatmul.mubr.f32.gmra.mxu0 %v1422
        %v1424 = vpop.f32.mrf.mxu0
        %v1425 = vadd.f32 %v1122, %v1424
        %v1426 = vpop.f32.mrf.mxu0
        %1427 = vmatprep.mubr.f32.mxu0 0.0
        %v1428 = vand.u32 %v243, 4294901760
        %v1429 = vsub.f32 %v243, %v1428
        %v1430 = vand.u32 %v1429, 4294901760
        %1431 = vmatmul.mubr.f32.gmra.mxu0 %v1430
        %v1432 = vpop.f32.mrf.mxu0
        %v1433 = vadd.f32 %v1129, %v1432
        %v1434 = vpop.f32.mrf.mxu0
        %1435 = vmatprep.mubr.f32.mxu0 0.0
        %v1436 = vand.u32 %v246, 4294901760
        %v1437 = vsub.f32 %v246, %v1436
        %v1438 = vand.u32 %v1437, 4294901760
        %1439 = vmatmul.mubr.f32.gmra.mxu0 %v1438
        %v1440 = vpop.f32.mrf.mxu0
        %v1441 = vadd.f32 %v1136, %v1440
        %v1442 = vpop.f32.mrf.mxu0
        %1443 = vmatprep.mubr.f32.mxu0 0.0
        %v1444 = vand.u32 %v249, 4294901760
        %v1445 = vsub.f32 %v249, %v1444
        %v1446 = vand.u32 %v1445, 4294901760
        %1447 = vmatmul.mubr.f32.gmra.mxu0 %v1446
        %v1448 = vpop.f32.mrf.mxu0
        %v1449 = vadd.f32 %v1143, %v1448
        %v1450 = vpop.f32.mrf.mxu0
        %1451 = vmatprep.mubr.f32.mxu0 0.0
        %v1452 = vand.u32 %v252, 4294901760
        %v1453 = vsub.f32 %v252, %v1452
        %v1454 = vand.u32 %v1453, 4294901760
        %1455 = vmatmul.mubr.f32.gmra.mxu0 %v1454
        %v1456 = vpop.f32.mrf.mxu0
        %v1457 = vadd.f32 %v1150, %v1456
        %v1458 = vpop.f32.mrf.mxu0
        %1459 = vmatprep.mubr.f32.mxu0 0.0
        %v1460 = vand.u32 %v255, 4294901760
        %v1461 = vsub.f32 %v255, %v1460
        %v1462 = vand.u32 %v1461, 4294901760
        %1463 = vmatmul.mubr.f32.gmra.mxu0 %v1462
        %v1464 = vpop.f32.mrf.mxu0
        %v1465 = vadd.f32 %v1157, %v1464
        %v1466 = vpop.f32.mrf.mxu0
        %1467 = vmatprep.mubr.f32.mxu0 0.0
        %v1468 = vand.u32 %v258, 4294901760
        %v1469 = vsub.f32 %v258, %v1468
        %v1470 = vand.u32 %v1469, 4294901760
        %1471 = vmatmul.mubr.f32.gmra.mxu0 %v1470
        %v1472 = vpop.f32.mrf.mxu0
        %v1473 = vadd.f32 %v1164, %v1472
        %v1474 = vpop.f32.mrf.mxu0
        %1475 = vmatprep.mubr.f32.mxu0 0.0
        %v1476 = vand.u32 %v261, 4294901760
        %v1477 = vsub.f32 %v261, %v1476
        %v1478 = vand.u32 %v1477, 4294901760
        %1479 = vmatmul.mubr.f32.gmra.mxu0 %v1478
        %v1480 = vpop.f32.mrf.mxu0
        %v1481 = vadd.f32 %v1171, %v1480
        %v1482 = vpop.f32.mrf.mxu0
        %1483 = vmatprep.mubr.f32.mxu0 0.0
        %v1484 = vand.u32 %v264, 4294901760
        %v1485 = vsub.f32 %v264, %v1484
        %v1486 = vand.u32 %v1485, 4294901760
        %1487 = vmatmul.mubr.f32.gmra.mxu0 %v1486
        %v1488 = vpop.f32.mrf.mxu0
        %v1489 = vadd.f32 %v1178, %v1488
        %v1490 = vpop.f32.mrf.mxu0
        %1491 = vmatprep.mubr.f32.mxu0 0.0
        %v1492 = vand.u32 %v267, 4294901760
        %v1493 = vsub.f32 %v267, %v1492
        %v1494 = vand.u32 %v1493, 4294901760
        %1495 = vmatmul.mubr.f32.gmra.mxu0 %v1494
        %v1496 = vpop.f32.mrf.mxu0
        %v1497 = vadd.f32 %v1185, %v1496
        %v1498 = vpop.f32.mrf.mxu0
        %1499 = vmatprep.mubr.f32.mxu0 0.0
        %v1500 = vand.u32 %v270, 4294901760
        %v1501 = vsub.f32 %v270, %v1500
        %v1502 = vand.u32 %v1501, 4294901760
        %1503 = vmatmul.mubr.f32.gmra.mxu0 %v1502
        %v1504 = vpop.f32.mrf.mxu0
        %v1505 = vadd.f32 %v1192, %v1504
        %v1506 = vpop.f32.mrf.mxu0
        %1507 = vmatprep.mubr.f32.mxu0 0.0
        %v1508 = vand.u32 %v273, 4294901760
        %v1509 = vsub.f32 %v273, %v1508
        %v1510 = vand.u32 %v1509, 4294901760
        %1511 = vmatmul.mubr.f32.gmra.mxu0 %v1510
        %v1512 = vpop.f32.mrf.mxu0
        %v1513 = vadd.f32 %v1199, %v1512
        %v1514 = vpop.f32.mrf.mxu0
        %1515 = vmatprep.mubr.f32.mxu0 0.0
        %v1516 = vand.u32 %v276, 4294901760
        %v1517 = vsub.f32 %v276, %v1516
        %v1518 = vand.u32 %v1517, 4294901760
        %1519 = vmatmul.mubr.f32.gmra.mxu0 %v1518
        %v1520 = vpop.f32.mrf.mxu0
        %v1521 = vadd.f32 %v1206, %v1520
        %v1522 = vpop.f32.mrf.mxu0
        %1523 = vmatprep.mubr.f32.mxu0 0.0
        %v1524 = vand.u32 %v279, 4294901760
        %v1525 = vsub.f32 %v279, %v1524
        %v1526 = vand.u32 %v1525, 4294901760
        %1527 = vmatmul.mubr.f32.gmra.mxu0 %v1526
        %v1528 = vpop.f32.mrf.mxu0
        %v1529 = vadd.f32 %v1213, %v1528
        %v1530 = vpop.f32.mrf.mxu0
        %1531 = vmatprep.mubr.f32.mxu0 0.0
        %v1532 = vand.u32 %v282, 4294901760
        %v1533 = vsub.f32 %v282, %v1532
        %v1534 = vand.u32 %v1533, 4294901760
        %1535 = vmatmul.mubr.f32.gmra.mxu0 %v1534
        %v1536 = vpop.f32.mrf.mxu0
        %v1537 = vadd.f32 %v1220, %v1536
        %v1538 = vpop.f32.mrf.mxu0
        %1539 = vmatprep.mubr.f32.mxu0 0.0
        %v1540 = vand.u32 %v285, 4294901760
        %v1541 = vsub.f32 %v285, %v1540
        %v1542 = vand.u32 %v1541, 4294901760
        %1543 = vmatmul.mubr.f32.gmra.mxu0 %v1542
        %v1544 = vpop.f32.mrf.mxu0
        %v1545 = vadd.f32 %v1227, %v1544
        %v1546 = vpop.f32.mrf.mxu0
        %1547 = vmatprep.mubr.f32.mxu0 0.0
        %v1548 = vand.u32 %v288, 4294901760
        %v1549 = vsub.f32 %v288, %v1548
        %v1550 = vand.u32 %v1549, 4294901760
        %1551 = vmatmul.mubr.f32.gmra.mxu0 %v1550
        %v1552 = vpop.f32.mrf.mxu0
        %v1553 = vadd.f32 %v1234, %v1552
        %v1554 = vpop.f32.mrf.mxu0
        %1555 = vmatprep.mubr.f32.mxu0 0.0
        %v1556 = vand.u32 %v291, 4294901760
        %v1557 = vsub.f32 %v291, %v1556
        %v1558 = vand.u32 %v1557, 4294901760
        %1559 = vmatmul.mubr.f32.gmra.mxu0 %v1558
        %v1560 = vpop.f32.mrf.mxu0
        %v1561 = vadd.f32 %v1241, %v1560
        %v1562 = vpop.f32.mrf.mxu0
        %1563 = vmatprep.mubr.f32.mxu0 0.0
        %v1564 = vand.u32 %v294, 4294901760
        %v1565 = vsub.f32 %v294, %v1564
        %v1566 = vand.u32 %v1565, 4294901760
        %1567 = vmatmul.mubr.f32.gmra.mxu0 %v1566
        %v1568 = vpop.f32.mrf.mxu0
        %v1569 = vadd.f32 %v1248, %v1568
        %v1570 = vpop.f32.mrf.mxu0
        %1571 = vmatprep.mubr.f32.mxu0 0.0
        %v1572 = vand.u32 %v297, 4294901760
        %v1573 = vsub.f32 %v297, %v1572
        %v1574 = vand.u32 %v1573, 4294901760
        %1575 = vmatmul.mubr.f32.gmra.mxu0 %v1574
        %v1576 = vpop.f32.mrf.mxu0
        %v1577 = vadd.f32 %v1255, %v1576
        %v1578 = vpop.f32.mrf.mxu0
        %1579 = vmatprep.mubr.f32.mxu0 0.0
        %v1580 = vand.u32 %v300, 4294901760
        %v1581 = vsub.f32 %v300, %v1580
        %v1582 = vand.u32 %v1581, 4294901760
        %1583 = vmatmul.mubr.f32.gmra.mxu0 %v1582
        %v1584 = vpop.f32.mrf.mxu0
        %v1585 = vadd.f32 %v1262, %v1584
        %v1586 = vpop.f32.mrf.mxu0
        %1587 = vmatprep.mubr.f32.mxu0 0.0
        %v1588 = vand.u32 %v303, 4294901760
        %v1589 = vsub.f32 %v303, %v1588
        %v1590 = vand.u32 %v1589, 4294901760
        %1591 = vmatmul.mubr.f32.gmra.mxu0 %v1590
        %v1592 = vpop.f32.mrf.mxu0
        %v1593 = vadd.f32 %v1269, %v1592
        %v1594 = vpop.f32.mrf.mxu0
        %1595 = vmatprep.mubr.f32.mxu0 0.0
        %v1596 = vand.u32 %v306, 4294901760
        %v1597 = vsub.f32 %v306, %v1596
        %v1598 = vand.u32 %v1597, 4294901760
        %1599 = vmatmul.mubr.f32.gmra.mxu0 %v1598
        %v1600 = vpop.f32.mrf.mxu0
        %v1601 = vadd.f32 %v1276, %v1600
        %v1602 = vpop.f32.mrf.mxu0
        %1603 = vmatprep.mubr.f32.mxu0 0.0
        %v1604 = vand.u32 %v309, 4294901760
        %v1605 = vsub.f32 %v309, %v1604
        %v1606 = vand.u32 %v1605, 4294901760
        %1607 = vmatmul.mubr.f32.gmra.mxu0 %v1606
        %v1608 = vpop.f32.mrf.mxu0
        %v1609 = vadd.f32 %v1283, %v1608
        %v1610 = vpop.f32.mrf.mxu0
        %1611 = vmatprep.mubr.f32.mxu0 0.0
        %v1612 = vand.u32 %v312, 4294901760
        %v1613 = vsub.f32 %v312, %v1612
        %v1614 = vand.u32 %v1613, 4294901760
        %1615 = vmatmul.mubr.f32.gmra.mxu0 %v1614
        %v1616 = vpop.f32.mrf.mxu0
        %v1617 = vadd.f32 %v1290, %v1616
        %v1618 = vpop.f32.mrf.mxu0
        %1619 = vdwg.mxu0
        %1620 = vmatprep.subr.mxu0 0.0
        %1621 = vmatpush1.msra.mxu0 0.0
        %1622 = vmatprep.subr.mxu0 0.0
        %1623 = vmatpush1.msra.mxu0 0.0
        %1624 = vmatprep.subr.mxu0 0.0
        %1625 = vmatpush1.msra.mxu0 0.0
        %1626 = vmatprep.subr.mxu0 0.0
        %1627 = vmatpush1.msra.mxu0 0.0
        %1628 = vmatprep.subr.mxu0 0.0
        %1629 = vmatpush1.msra.mxu0 0.0
        %1630 = vmatprep.subr.mxu0 0.0
        %1631 = vmatpush1.msra.mxu0 0.0
        %1632 = vmatprep.subr.mxu0 0.0
        %1633 = vmatpush1.msra.mxu0 0.0
        %1634 = vmatprep.subr.mxu0 0.0
        %1635 = vmatpush1.msra.mxu0 0.0
        %1636 = vmatprep.subr.mxu0 0.0
        %1637 = vmatpush1.msra.mxu0 0.0
        %1638 = vmatprep.subr.mxu0 0.0
        %1639 = vmatpush1.msra.mxu0 0.0
        %1640 = vmatprep.subr.mxu0 0.0
        %v1641 = vand.u32 %v209, 4294901760
        %v1642 = vsub.f32 %v209, %v1641
        %v1643 = vand.u32 %v1642, 4294901760
        %1644 = vmatpush1.msra.mxu0 %v1643
        %1645 = vmatprep.subr.mxu0 0.0
        %v1646 = vand.u32 %v208, 4294901760
        %v1647 = vsub.f32 %v208, %v1646
        %v1648 = vand.u32 %v1647, 4294901760
        %1649 = vmatpush1.msra.mxu0 %v1648
        %1650 = vmatprep.subr.mxu0 0.0
        %v1651 = vand.u32 %v207, 4294901760
        %v1652 = vsub.f32 %v207, %v1651
        %v1653 = vand.u32 %v1652, 4294901760
        %1654 = vmatpush1.msra.mxu0 %v1653
        %1655 = vmatprep.subr.mxu0 0.0
        %v1656 = vand.u32 %v206, 4294901760
        %v1657 = vsub.f32 %v206, %v1656
        %v1658 = vand.u32 %v1657, 4294901760
        %1659 = vmatpush1.msra.mxu0 %v1658
        %1660 = vmatprep.subr.mxu0 0.0
        %v1661 = vand.u32 %v205, 4294901760
        %v1662 = vsub.f32 %v205, %v1661
        %v1663 = vand.u32 %v1662, 4294901760
        %1664 = vmatpush1.msra.mxu0 %v1663
        %1665 = vmatprep.subr.mxu0 0.0
        %v1666 = vand.u32 %v204, 4294901760
        %v1667 = vsub.f32 %v204, %v1666
        %v1668 = vand.u32 %v1667, 4294901760
        %1669 = vmatpush1.msra.mxu0 %v1668
        %1670 = vmatprep.subr.mxu0 0.0
        %1671 = vmatpush2.msra.mxu0 0.0
        %1672 = vmatprep.subr.mxu0 0.0
        %1673 = vmatpush2.msra.mxu0 0.0
        %1674 = vmatprep.subr.mxu0 0.0
        %1675 = vmatpush2.msra.mxu0 0.0
        %1676 = vmatprep.subr.mxu0 0.0
        %1677 = vmatpush2.msra.mxu0 0.0
        %1678 = vmatprep.subr.mxu0 0.0
        %1679 = vmatpush2.msra.mxu0 0.0
        %1680 = vmatprep.subr.mxu0 0.0
        %1681 = vmatpush2.msra.mxu0 0.0
        %1682 = vmatprep.subr.mxu0 0.0
        %1683 = vmatpush2.msra.mxu0 0.0
        %1684 = vmatprep.subr.mxu0 0.0
        %1685 = vmatpush2.msra.mxu0 0.0
        %1686 = vmatprep.subr.mxu0 0.0
        %1687 = vmatpush2.msra.mxu0 0.0
        %1688 = vmatprep.subr.mxu0 0.0
        %1689 = vmatpush2.msra.mxu0 0.0
        %1690 = vmatprep.subr.mxu0 0.0
        %1691 = vmatpush2.msra.mxu0 0.0
        %1692 = vmatprep.subr.mxu0 0.0
        %1693 = vmatpush2.msra.mxu0 0.0
        %1694 = vmatprep.subr.mxu0 0.0
        %1695 = vmatpush2.msra.mxu0 0.0
        %1696 = vmatprep.subr.mxu0 0.0
        %1697 = vmatpush2.msra.mxu0 0.0
        %1698 = vmatprep.subr.mxu0 0.0
        %1699 = vmatpush2.msra.mxu0 0.0
        %1700 = vmatprep.subr.mxu0 0.0
        %1701 = vmatpush2.msra.mxu0 0.0
        %1702 = vmatprep.mubr.f32.mxu0 0.0
        %v1703 = vand.u32 %v219, 4294901760
        %1704 = vmatmul.mubr.f32.gmra.mxu0 %v1703
        %v1705 = vpop.f32.mrf.mxu0
        %v1706 = vadd.f32 %v1369, %v1705
        %v1707 = vpop.f32.mrf.mxu0
        %1708 = vmatprep.mubr.f32.mxu0 0.0
        %v1709 = vand.u32 %v222, 4294901760
        %1710 = vmatmul.mubr.f32.gmra.mxu0 %v1709
        %v1711 = vpop.f32.mrf.mxu0
        %v1712 = vadd.f32 %v1377, %v1711
        %v1713 = vpop.f32.mrf.mxu0
        %1714 = vmatprep.mubr.f32.mxu0 0.0
        %v1715 = vand.u32 %v225, 4294901760
        %1716 = vmatmul.mubr.f32.gmra.mxu0 %v1715
        %v1717 = vpop.f32.mrf.mxu0
        %v1718 = vadd.f32 %v1385, %v1717
        %v1719 = vpop.f32.mrf.mxu0
        %1720 = vmatprep.mubr.f32.mxu0 0.0
        %v1721 = vand.u32 %v228, 4294901760
        %1722 = vmatmul.mubr.f32.gmra.mxu0 %v1721
        %v1723 = vpop.f32.mrf.mxu0
        %v1724 = vadd.f32 %v1393, %v1723
        %v1725 = vpop.f32.mrf.mxu0
        %1726 = vmatprep.mubr.f32.mxu0 0.0
        %v1727 = vand.u32 %v231, 4294901760
        %1728 = vmatmul.mubr.f32.gmra.mxu0 %v1727
        %v1729 = vpop.f32.mrf.mxu0
        %v1730 = vadd.f32 %v1401, %v1729
        %v1731 = vpop.f32.mrf.mxu0
        %1732 = vmatprep.mubr.f32.mxu0 0.0
        %v1733 = vand.u32 %v234, 4294901760
        %1734 = vmatmul.mubr.f32.gmra.mxu0 %v1733
        %v1735 = vpop.f32.mrf.mxu0
        %v1736 = vadd.f32 %v1409, %v1735
        %v1737 = vpop.f32.mrf.mxu0
        %1738 = vmatprep.mubr.f32.mxu0 0.0
        %v1739 = vand.u32 %v237, 4294901760
        %1740 = vmatmul.mubr.f32.gmra.mxu0 %v1739
        %v1741 = vpop.f32.mrf.mxu0
        %v1742 = vadd.f32 %v1417, %v1741
        %v1743 = vpop.f32.mrf.mxu0
        %1744 = vmatprep.mubr.f32.mxu0 0.0
        %v1745 = vand.u32 %v240, 4294901760
        %1746 = vmatmul.mubr.f32.gmra.mxu0 %v1745
        %v1747 = vpop.f32.mrf.mxu0
        %v1748 = vadd.f32 %v1425, %v1747
        %v1749 = vpop.f32.mrf.mxu0
        %1750 = vmatprep.mubr.f32.mxu0 0.0
        %v1751 = vand.u32 %v243, 4294901760
        %1752 = vmatmul.mubr.f32.gmra.mxu0 %v1751
        %v1753 = vpop.f32.mrf.mxu0
        %v1754 = vadd.f32 %v1433, %v1753
        %v1755 = vpop.f32.mrf.mxu0
        %1756 = vmatprep.mubr.f32.mxu0 0.0
        %v1757 = vand.u32 %v246, 4294901760
        %1758 = vmatmul.mubr.f32.gmra.mxu0 %v1757
        %v1759 = vpop.f32.mrf.mxu0
        %v1760 = vadd.f32 %v1441, %v1759
        %v1761 = vpop.f32.mrf.mxu0
        %1762 = vmatprep.mubr.f32.mxu0 0.0
        %v1763 = vand.u32 %v249, 4294901760
        %1764 = vmatmul.mubr.f32.gmra.mxu0 %v1763
        %v1765 = vpop.f32.mrf.mxu0
        %v1766 = vadd.f32 %v1449, %v1765
        %v1767 = vpop.f32.mrf.mxu0
        %1768 = vmatprep.mubr.f32.mxu0 0.0
        %v1769 = vand.u32 %v252, 4294901760
        %1770 = vmatmul.mubr.f32.gmra.mxu0 %v1769
        %v1771 = vpop.f32.mrf.mxu0
        %v1772 = vadd.f32 %v1457, %v1771
        %v1773 = vpop.f32.mrf.mxu0
        %1774 = vmatprep.mubr.f32.mxu0 0.0
        %v1775 = vand.u32 %v255, 4294901760
        %1776 = vmatmul.mubr.f32.gmra.mxu0 %v1775
        %v1777 = vpop.f32.mrf.mxu0
        %v1778 = vadd.f32 %v1465, %v1777
        %v1779 = vpop.f32.mrf.mxu0
        %1780 = vmatprep.mubr.f32.mxu0 0.0
        %v1781 = vand.u32 %v258, 4294901760
        %1782 = vmatmul.mubr.f32.gmra.mxu0 %v1781
        %v1783 = vpop.f32.mrf.mxu0
        %v1784 = vadd.f32 %v1473, %v1783
        %v1785 = vpop.f32.mrf.mxu0
        %1786 = vmatprep.mubr.f32.mxu0 0.0
        %v1787 = vand.u32 %v261, 4294901760
        %1788 = vmatmul.mubr.f32.gmra.mxu0 %v1787
        %v1789 = vpop.f32.mrf.mxu0
        %v1790 = vadd.f32 %v1481, %v1789
        %v1791 = vpop.f32.mrf.mxu0
        %1792 = vmatprep.mubr.f32.mxu0 0.0
        %v1793 = vand.u32 %v264, 4294901760
        %1794 = vmatmul.mubr.f32.gmra.mxu0 %v1793
        %v1795 = vpop.f32.mrf.mxu0
        %v1796 = vadd.f32 %v1489, %v1795
        %v1797 = vpop.f32.mrf.mxu0
        %1798 = vmatprep.mubr.f32.mxu0 0.0
        %v1799 = vand.u32 %v267, 4294901760
        %1800 = vmatmul.mubr.f32.gmra.mxu0 %v1799
        %v1801 = vpop.f32.mrf.mxu0
        %v1802 = vadd.f32 %v1497, %v1801
        %v1803 = vpop.f32.mrf.mxu0
        %1804 = vmatprep.mubr.f32.mxu0 0.0
        %v1805 = vand.u32 %v270, 4294901760
        %1806 = vmatmul.mubr.f32.gmra.mxu0 %v1805
        %v1807 = vpop.f32.mrf.mxu0
        %v1808 = vadd.f32 %v1505, %v1807
        %v1809 = vpop.f32.mrf.mxu0
        %1810 = vmatprep.mubr.f32.mxu0 0.0
        %v1811 = vand.u32 %v273, 4294901760
        %1812 = vmatmul.mubr.f32.gmra.mxu0 %v1811
        %v1813 = vpop.f32.mrf.mxu0
        %v1814 = vadd.f32 %v1513, %v1813
        %v1815 = vpop.f32.mrf.mxu0
        %1816 = vmatprep.mubr.f32.mxu0 0.0
        %v1817 = vand.u32 %v276, 4294901760
        %1818 = vmatmul.mubr.f32.gmra.mxu0 %v1817
        %v1819 = vpop.f32.mrf.mxu0
        %v1820 = vadd.f32 %v1521, %v1819
        %v1821 = vpop.f32.mrf.mxu0
        %1822 = vmatprep.mubr.f32.mxu0 0.0
        %v1823 = vand.u32 %v279, 4294901760
        %1824 = vmatmul.mubr.f32.gmra.mxu0 %v1823
        %v1825 = vpop.f32.mrf.mxu0
        %v1826 = vadd.f32 %v1529, %v1825
        %v1827 = vpop.f32.mrf.mxu0
        %1828 = vmatprep.mubr.f32.mxu0 0.0
        %v1829 = vand.u32 %v282, 4294901760
        %1830 = vmatmul.mubr.f32.gmra.mxu0 %v1829
        %v1831 = vpop.f32.mrf.mxu0
        %v1832 = vadd.f32 %v1537, %v1831
        %v1833 = vpop.f32.mrf.mxu0
        %1834 = vmatprep.mubr.f32.mxu0 0.0
        %v1835 = vand.u32 %v285, 4294901760
        %1836 = vmatmul.mubr.f32.gmra.mxu0 %v1835
        %v1837 = vpop.f32.mrf.mxu0
        %v1838 = vadd.f32 %v1545, %v1837
        %v1839 = vpop.f32.mrf.mxu0
        %1840 = vmatprep.mubr.f32.mxu0 0.0
        %v1841 = vand.u32 %v288, 4294901760
        %1842 = vmatmul.mubr.f32.gmra.mxu0 %v1841
        %v1843 = vpop.f32.mrf.mxu0
        %v1844 = vadd.f32 %v1553, %v1843
        %v1845 = vpop.f32.mrf.mxu0
        %1846 = vmatprep.mubr.f32.mxu0 0.0
        %v1847 = vand.u32 %v291, 4294901760
        %1848 = vmatmul.mubr.f32.gmra.mxu0 %v1847
        %v1849 = vpop.f32.mrf.mxu0
        %v1850 = vadd.f32 %v1561, %v1849
        %v1851 = vpop.f32.mrf.mxu0
        %1852 = vmatprep.mubr.f32.mxu0 0.0
        %v1853 = vand.u32 %v294, 4294901760
        %1854 = vmatmul.mubr.f32.gmra.mxu0 %v1853
        %v1855 = vpop.f32.mrf.mxu0
        %v1856 = vadd.f32 %v1569, %v1855
        %v1857 = vpop.f32.mrf.mxu0
        %1858 = vmatprep.mubr.f32.mxu0 0.0
        %v1859 = vand.u32 %v297, 4294901760
        %1860 = vmatmul.mubr.f32.gmra.mxu0 %v1859
        %v1861 = vpop.f32.mrf.mxu0
        %v1862 = vadd.f32 %v1577, %v1861
        %v1863 = vpop.f32.mrf.mxu0
        %1864 = vmatprep.mubr.f32.mxu0 0.0
        %v1865 = vand.u32 %v300, 4294901760
        %1866 = vmatmul.mubr.f32.gmra.mxu0 %v1865
        %v1867 = vpop.f32.mrf.mxu0
        %v1868 = vadd.f32 %v1585, %v1867
        %v1869 = vpop.f32.mrf.mxu0
        %1870 = vmatprep.mubr.f32.mxu0 0.0
        %v1871 = vand.u32 %v303, 4294901760
        %1872 = vmatmul.mubr.f32.gmra.mxu0 %v1871
        %v1873 = vpop.f32.mrf.mxu0
        %v1874 = vadd.f32 %v1593, %v1873
        %v1875 = vpop.f32.mrf.mxu0
        %1876 = vmatprep.mubr.f32.mxu0 0.0
        %v1877 = vand.u32 %v306, 4294901760
        %1878 = vmatmul.mubr.f32.gmra.mxu0 %v1877
        %v1879 = vpop.f32.mrf.mxu0
        %v1880 = vadd.f32 %v1601, %v1879
        %v1881 = vpop.f32.mrf.mxu0
        %1882 = vmatprep.mubr.f32.mxu0 0.0
        %v1883 = vand.u32 %v309, 4294901760
        %1884 = vmatmul.mubr.f32.gmra.mxu0 %v1883
        %v1885 = vpop.f32.mrf.mxu0
        %v1886 = vadd.f32 %v1609, %v1885
        %v1887 = vpop.f32.mrf.mxu0
        %1888 = vmatprep.mubr.f32.mxu0 0.0
        %v1889 = vand.u32 %v312, 4294901760
        %1890 = vmatmul.mubr.f32.gmra.mxu0 %v1889
        %v1891 = vpop.f32.mrf.mxu0
        %v1892 = vadd.f32 %v1617, %v1891
        %v1893 = vpop.f32.mrf.mxu0
        %1894 = vdwg.mxu0
        %1895 = vmatprep.subr.mxu0 0.0
        %1896 = vmatpush1.msra.mxu0 0.0
        %1897 = vmatprep.subr.mxu0 0.0
        %1898 = vmatpush1.msra.mxu0 0.0
        %1899 = vmatprep.subr.mxu0 0.0
        %1900 = vmatpush1.msra.mxu0 0.0
        %1901 = vmatprep.subr.mxu0 0.0
        %1902 = vmatpush1.msra.mxu0 0.0
        %1903 = vmatprep.subr.mxu0 0.0
        %1904 = vmatpush1.msra.mxu0 0.0
        %1905 = vmatprep.subr.mxu0 0.0
        %1906 = vmatpush1.msra.mxu0 0.0
        %1907 = vmatprep.subr.mxu0 0.0
        %1908 = vmatpush1.msra.mxu0 0.0
        %1909 = vmatprep.subr.mxu0 0.0
        %1910 = vmatpush1.msra.mxu0 0.0
        %1911 = vmatprep.subr.mxu0 0.0
        %1912 = vmatpush1.msra.mxu0 0.0
        %1913 = vmatprep.subr.mxu0 0.0
        %1914 = vmatpush1.msra.mxu0 0.0
        %1915 = vmatprep.subr.mxu0 0.0
        %v1916 = vand.u32 %v209, 4294901760
        %1917 = vmatpush1.msra.mxu0 %v1916
        %1918 = vmatprep.subr.mxu0 0.0
        %v1919 = vand.u32 %v208, 4294901760
        %1920 = vmatpush1.msra.mxu0 %v1919
        %1921 = vmatprep.subr.mxu0 0.0
        %v1922 = vand.u32 %v207, 4294901760
        %1923 = vmatpush1.msra.mxu0 %v1922
        %1924 = vmatprep.subr.mxu0 0.0
        %v1925 = vand.u32 %v206, 4294901760
        %1926 = vmatpush1.msra.mxu0 %v1925
        %1927 = vmatprep.subr.mxu0 0.0
        %v1928 = vand.u32 %v205, 4294901760
        %1929 = vmatpush1.msra.mxu0 %v1928
        %1930 = vmatprep.subr.mxu0 0.0
        %v1931 = vand.u32 %v204, 4294901760
        %1932 = vmatpush1.msra.mxu0 %v1931
        %1933 = vmatprep.subr.mxu0 0.0
        %1934 = vmatpush2.msra.mxu0 0.0
        %1935 = vmatprep.subr.mxu0 0.0
        %1936 = vmatpush2.msra.mxu0 0.0
        %1937 = vmatprep.subr.mxu0 0.0
        %1938 = vmatpush2.msra.mxu0 0.0
        %1939 = vmatprep.subr.mxu0 0.0
        %1940 = vmatpush2.msra.mxu0 0.0
        %1941 = vmatprep.subr.mxu0 0.0
        %1942 = vmatpush2.msra.mxu0 0.0
        %1943 = vmatprep.subr.mxu0 0.0
        %1944 = vmatpush2.msra.mxu0 0.0
        %1945 = vmatprep.subr.mxu0 0.0
        %1946 = vmatpush2.msra.mxu0 0.0
        %1947 = vmatprep.subr.mxu0 0.0
        %1948 = vmatpush2.msra.mxu0 0.0
        %1949 = vmatprep.subr.mxu0 0.0
        %1950 = vmatpush2.msra.mxu0 0.0
        %1951 = vmatprep.subr.mxu0 0.0
        %1952 = vmatpush2.msra.mxu0 0.0
        %1953 = vmatprep.subr.mxu0 0.0
        %1954 = vmatpush2.msra.mxu0 0.0
        %1955 = vmatprep.subr.mxu0 0.0
        %1956 = vmatpush2.msra.mxu0 0.0
        %1957 = vmatprep.subr.mxu0 0.0
        %1958 = vmatpush2.msra.mxu0 0.0
        %1959 = vmatprep.subr.mxu0 0.0
        %1960 = vmatpush2.msra.mxu0 0.0
        %1961 = vmatprep.subr.mxu0 0.0
        %1962 = vmatpush2.msra.mxu0 0.0
        %1963 = vmatprep.subr.mxu0 0.0
        %1964 = vmatpush2.msra.mxu0 0.0
        %1965 = vmatprep.mubr.f32.mxu0 0.0
        %v1966 = vand.u32 %v219, 4294901760
        %1967 = vmatmul.mubr.f32.gmra.mxu0 %v1966
        %v1968 = vpop.f32.mrf.mxu0
        %v1969 = vadd.f32 %v1706, %v1968
        %v1970 = vpop.f32.mrf.mxu0
        %1971 = vmatprep.mubr.f32.mxu0 0.0
        %v1972 = vand.u32 %v222, 4294901760
        %1973 = vmatmul.mubr.f32.gmra.mxu0 %v1972
        %v1974 = vpop.f32.mrf.mxu0
        %v1975 = vadd.f32 %v1712, %v1974
        %v1976 = vpop.f32.mrf.mxu0
        %1977 = vmatprep.mubr.f32.mxu0 0.0
        %v1978 = vand.u32 %v225, 4294901760
        %1979 = vmatmul.mubr.f32.gmra.mxu0 %v1978
        %v1980 = vpop.f32.mrf.mxu0
        %v1981 = vadd.f32 %v1718, %v1980
        %v1982 = vpop.f32.mrf.mxu0
        %1983 = vmatprep.mubr.f32.mxu0 0.0
        %v1984 = vand.u32 %v228, 4294901760
        %1985 = vmatmul.mubr.f32.gmra.mxu0 %v1984
        %v1986 = vpop.f32.mrf.mxu0
        %v1987 = vadd.f32 %v1724, %v1986
        %v1988 = vpop.f32.mrf.mxu0
        %1989 = vmatprep.mubr.f32.mxu0 0.0
        %v1990 = vand.u32 %v231, 4294901760
        %1991 = vmatmul.mubr.f32.gmra.mxu0 %v1990
        %v1992 = vpop.f32.mrf.mxu0
        %v1993 = vadd.f32 %v1730, %v1992
        %v1994 = vpop.f32.mrf.mxu0
        %1995 = vmatprep.mubr.f32.mxu0 0.0
        %v1996 = vand.u32 %v234, 4294901760
        %1997 = vmatmul.mubr.f32.gmra.mxu0 %v1996
        %v1998 = vpop.f32.mrf.mxu0
        %v1999 = vadd.f32 %v1736, %v1998
        %v2000 = vpop.f32.mrf.mxu0
        %2001 = vmatprep.mubr.f32.mxu0 0.0
        %v2002 = vand.u32 %v237, 4294901760
        %2003 = vmatmul.mubr.f32.gmra.mxu0 %v2002
        %v2004 = vpop.f32.mrf.mxu0
        %v2005 = vadd.f32 %v1742, %v2004
        %v2006 = vpop.f32.mrf.mxu0
        %2007 = vmatprep.mubr.f32.mxu0 0.0
        %v2008 = vand.u32 %v240, 4294901760
        %2009 = vmatmul.mubr.f32.gmra.mxu0 %v2008
        %v2010 = vpop.f32.mrf.mxu0
        %v2011 = vadd.f32 %v1748, %v2010
        %v2012 = vpop.f32.mrf.mxu0
        %2013 = vmatprep.mubr.f32.mxu0 0.0
        %v2014 = vand.u32 %v243, 4294901760
        %2015 = vmatmul.mubr.f32.gmra.mxu0 %v2014
        %v2016 = vpop.f32.mrf.mxu0
        %v2017 = vadd.f32 %v1754, %v2016
        %v2018 = vpop.f32.mrf.mxu0
        %2019 = vmatprep.mubr.f32.mxu0 0.0
        %v2020 = vand.u32 %v246, 4294901760
        %2021 = vmatmul.mubr.f32.gmra.mxu0 %v2020
        %v2022 = vpop.f32.mrf.mxu0
        %v2023 = vadd.f32 %v1760, %v2022
        %v2024 = vpop.f32.mrf.mxu0
        %2025 = vmatprep.mubr.f32.mxu0 0.0
        %v2026 = vand.u32 %v249, 4294901760
        %2027 = vmatmul.mubr.f32.gmra.mxu0 %v2026
        %v2028 = vpop.f32.mrf.mxu0
        %v2029 = vadd.f32 %v1766, %v2028
        %v2030 = vpop.f32.mrf.mxu0
        %2031 = vmatprep.mubr.f32.mxu0 0.0
        %v2032 = vand.u32 %v252, 4294901760
        %2033 = vmatmul.mubr.f32.gmra.mxu0 %v2032
        %v2034 = vpop.f32.mrf.mxu0
        %v2035 = vadd.f32 %v1772, %v2034
        %v2036 = vpop.f32.mrf.mxu0
        %2037 = vmatprep.mubr.f32.mxu0 0.0
        %v2038 = vand.u32 %v255, 4294901760
        %2039 = vmatmul.mubr.f32.gmra.mxu0 %v2038
        %v2040 = vpop.f32.mrf.mxu0
        %v2041 = vadd.f32 %v1778, %v2040
        %v2042 = vpop.f32.mrf.mxu0
        %2043 = vmatprep.mubr.f32.mxu0 0.0
        %v2044 = vand.u32 %v258, 4294901760
        %2045 = vmatmul.mubr.f32.gmra.mxu0 %v2044
        %v2046 = vpop.f32.mrf.mxu0
        %v2047 = vadd.f32 %v1784, %v2046
        %v2048 = vpop.f32.mrf.mxu0
        %2049 = vmatprep.mubr.f32.mxu0 0.0
        %v2050 = vand.u32 %v261, 4294901760
        %2051 = vmatmul.mubr.f32.gmra.mxu0 %v2050
        %v2052 = vpop.f32.mrf.mxu0
        %v2053 = vadd.f32 %v1790, %v2052
        %v2054 = vpop.f32.mrf.mxu0
        %2055 = vmatprep.mubr.f32.mxu0 0.0
        %v2056 = vand.u32 %v264, 4294901760
        %2057 = vmatmul.mubr.f32.gmra.mxu0 %v2056
        %v2058 = vpop.f32.mrf.mxu0
        %v2059 = vadd.f32 %v1796, %v2058
        %v2060 = vpop.f32.mrf.mxu0
        %2061 = vmatprep.mubr.f32.mxu0 0.0
        %v2062 = vand.u32 %v267, 4294901760
        %2063 = vmatmul.mubr.f32.gmra.mxu0 %v2062
        %v2064 = vpop.f32.mrf.mxu0
        %v2065 = vadd.f32 %v1802, %v2064
        %v2066 = vpop.f32.mrf.mxu0
        %2067 = vmatprep.mubr.f32.mxu0 0.0
        %v2068 = vand.u32 %v270, 4294901760
        %2069 = vmatmul.mubr.f32.gmra.mxu0 %v2068
        %v2070 = vpop.f32.mrf.mxu0
        %v2071 = vadd.f32 %v1808, %v2070
        %v2072 = vpop.f32.mrf.mxu0
        %2073 = vmatprep.mubr.f32.mxu0 0.0
        %v2074 = vand.u32 %v273, 4294901760
        %2075 = vmatmul.mubr.f32.gmra.mxu0 %v2074
        %v2076 = vpop.f32.mrf.mxu0
        %v2077 = vadd.f32 %v1814, %v2076
        %v2078 = vpop.f32.mrf.mxu0
        %2079 = vmatprep.mubr.f32.mxu0 0.0
        %v2080 = vand.u32 %v276, 4294901760
        %2081 = vmatmul.mubr.f32.gmra.mxu0 %v2080
        %v2082 = vpop.f32.mrf.mxu0
        %v2083 = vadd.f32 %v1820, %v2082
        %v2084 = vpop.f32.mrf.mxu0
        %2085 = vmatprep.mubr.f32.mxu0 0.0
        %v2086 = vand.u32 %v279, 4294901760
        %2087 = vmatmul.mubr.f32.gmra.mxu0 %v2086
        %v2088 = vpop.f32.mrf.mxu0
        %v2089 = vadd.f32 %v1826, %v2088
        %v2090 = vpop.f32.mrf.mxu0
        %2091 = vmatprep.mubr.f32.mxu0 0.0
        %v2092 = vand.u32 %v282, 4294901760
        %2093 = vmatmul.mubr.f32.gmra.mxu0 %v2092
        %v2094 = vpop.f32.mrf.mxu0
        %v2095 = vadd.f32 %v1832, %v2094
        %v2096 = vpop.f32.mrf.mxu0
        %2097 = vmatprep.mubr.f32.mxu0 0.0
        %v2098 = vand.u32 %v285, 4294901760
        %2099 = vmatmul.mubr.f32.gmra.mxu0 %v2098
        %v2100 = vpop.f32.mrf.mxu0
        %v2101 = vadd.f32 %v1838, %v2100
        %v2102 = vpop.f32.mrf.mxu0
        %2103 = vmatprep.mubr.f32.mxu0 0.0
        %v2104 = vand.u32 %v288, 4294901760
        %2105 = vmatmul.mubr.f32.gmra.mxu0 %v2104
        %v2106 = vpop.f32.mrf.mxu0
        %v2107 = vadd.f32 %v1844, %v2106
        %v2108 = vpop.f32.mrf.mxu0
        %2109 = vmatprep.mubr.f32.mxu0 0.0
        %v2110 = vand.u32 %v291, 4294901760
        %2111 = vmatmul.mubr.f32.gmra.mxu0 %v2110
        %v2112 = vpop.f32.mrf.mxu0
        %v2113 = vadd.f32 %v1850, %v2112
        %v2114 = vpop.f32.mrf.mxu0
        %2115 = vmatprep.mubr.f32.mxu0 0.0
        %v2116 = vand.u32 %v294, 4294901760
        %2117 = vmatmul.mubr.f32.gmra.mxu0 %v2116
        %v2118 = vpop.f32.mrf.mxu0
        %v2119 = vadd.f32 %v1856, %v2118
        %v2120 = vpop.f32.mrf.mxu0
        %2121 = vmatprep.mubr.f32.mxu0 0.0
        %v2122 = vand.u32 %v297, 4294901760
        %2123 = vmatmul.mubr.f32.gmra.mxu0 %v2122
        %v2124 = vpop.f32.mrf.mxu0
        %v2125 = vadd.f32 %v1862, %v2124
        %v2126 = vpop.f32.mrf.mxu0
        %2127 = vmatprep.mubr.f32.mxu0 0.0
        %v2128 = vand.u32 %v300, 4294901760
        %2129 = vmatmul.mubr.f32.gmra.mxu0 %v2128
        %v2130 = vpop.f32.mrf.mxu0
        %v2131 = vadd.f32 %v1868, %v2130
        %v2132 = vpop.f32.mrf.mxu0
        %2133 = vmatprep.mubr.f32.mxu0 0.0
        %v2134 = vand.u32 %v303, 4294901760
        %2135 = vmatmul.mubr.f32.gmra.mxu0 %v2134
        %v2136 = vpop.f32.mrf.mxu0
        %v2137 = vadd.f32 %v1874, %v2136
        %v2138 = vpop.f32.mrf.mxu0
        %2139 = vmatprep.mubr.f32.mxu0 0.0
        %v2140 = vand.u32 %v306, 4294901760
        %2141 = vmatmul.mubr.f32.gmra.mxu0 %v2140
        %v2142 = vpop.f32.mrf.mxu0
        %v2143 = vadd.f32 %v1880, %v2142
        %v2144 = vpop.f32.mrf.mxu0
        %2145 = vmatprep.mubr.f32.mxu0 0.0
        %v2146 = vand.u32 %v309, 4294901760
        %2147 = vmatmul.mubr.f32.gmra.mxu0 %v2146
        %v2148 = vpop.f32.mrf.mxu0
        %v2149 = vadd.f32 %v1886, %v2148
        %v2150 = vpop.f32.mrf.mxu0
        %2151 = vmatprep.mubr.f32.mxu0 0.0
        %v2152 = vand.u32 %v312, 4294901760
        %2153 = vmatmul.mubr.f32.gmra.mxu0 %v2152
        %v2154 = vpop.f32.mrf.mxu0
        %v2155 = vadd.f32 %v1892, %v2154
        %v2156 = vpop.f32.mrf.mxu0
        %2157 = vdwg.mxu0
        %2158 = vst [vmem:[%s164] sm:$0xff] %v1969
        %2159 = vst [vmem:[%s164 + $0x8] sm:$0xff] %v1975
        %2160 = vst [vmem:[%s164 + $0x10] sm:$0xff] %v1981
        %2161 = vst [vmem:[%s164 + $0x18] sm:$0xff] %v1987
        %2162 = vst [vmem:[%s164 + $0x20] sm:$0xff] %v1993
        %2163 = vst [vmem:[%s164 + $0x28] sm:$0xff] %v1999
        %2164 = vst [vmem:[%s164 + $0x30] sm:$0xff] %v2005
        %2165 = vst [vmem:[%s164 + $0x38] sm:$0xff] %v2011
        %2166 = vst [vmem:[%s164 + $0x40] sm:$0xff] %v2017
        %2167 = vst [vmem:[%s164 + $0x48] sm:$0xff] %v2023
        %2168 = vst [vmem:[%s164 + $0x50] sm:$0xff] %v2029
        %2169 = vst [vmem:[%s164 + $0x58] sm:$0xff] %v2035
        %2170 = vst [vmem:[%s164 + $0x60] sm:$0xff] %v2041
        %2171 = vst [vmem:[%s164 + $0x68] sm:$0xff] %v2047
        %2172 = vst [vmem:[%s164 + $0x70] sm:$0xff] %v2053
        %2173 = vst [vmem:[%s164 + $0x78] sm:$0xff] %v2059
        %2174 = vst [vmem:[%s164 + $0x80] sm:$0xff] %v2065
        %2175 = vst [vmem:[%s164 + $0x88] sm:$0xff] %v2071
        %2176 = vst [vmem:[%s164 + $0x90] sm:$0xff] %v2077
        %2177 = vst [vmem:[%s164 + $0x98] sm:$0xff] %v2083
        %2178 = vst [vmem:[%s164 + $0xa0] sm:$0xff] %v2089
        %2179 = vst [vmem:[%s164 + $0xa8] sm:$0xff] %v2095
        %2180 = vst [vmem:[%s164 + $0xb0] sm:$0xff] %v2101
        %2181 = vst [vmem:[%s164 + $0xb8] sm:$0xff] %v2107
        %2182 = vst [vmem:[%s164 + $0xc0] sm:$0xff] %v2113
        %2183 = vst [vmem:[%s164 + $0xc8] sm:$0xff] %v2119
        %2184 = vst [vmem:[%s164 + $0xd0] sm:$0xff] %v2125
        %2185 = vst [vmem:[%s164 + $0xd8] sm:$0xff] %v2131
        %2186 = vst [vmem:[%s164 + $0xe0] sm:$0xff] %v2137
        %2187 = vst [vmem:[%s164 + $0xe8] sm:$0xff] %v2143
        %2188 = vst [vmem:[%s164 + $0xf0] sm:$0xff] %v2149
        %2189 = vst [vmem:[%s164 + $0xf8] sm:$0xff] %v2155
        %s2190 = sand.u32 %s93, 1
        %s2191 = scalar_lea.sflag [#allocation3], %s2190
        %s2192 = sand.u32 %s93, 1
        %s2193 = smul.addr %s2192, 256
        %s2194 = scalar_lea.vmem [#allocation2], %s2193
        // Predicated region
        $region33: #{tpu_custom_call.1} parent=31 // pred_check
          %p2195 = pneg %p103
        $region34: #{tpu_custom_call.1} parent=31 // pred_check_branch
          %2197 = sbr.rel (%p2195) target = $region36
        $region35: #{tpu_custom_call.1} parent=31 // pred_region
          %s2198 = smul.u32 32, %s17
          %s2200 = ssub.s32 4096, 4096
          %2201 = vsyncadd %s2191, %s2200
          %s2202 = smul.addr %s2198, 128
          %s2203 = scalar_lea.hbm %s3, %s2202
          %s2204 = sshll.u32 %s2194, 4
          %s2205 = int_to_ptr.vmem [resolvable:$true] %s2204
          %2210 = dma.vmem_to_hbm [thread:$0]  %s2205, 4096, %s2203, %s2191, 128, 128, 8
        $region36: #{tpu_custom_call.1} parent=31 // pred_fallthru
          _
      $region32: #{tpu_custom_call.1} parent=5 // pred_fallthru
        _
      %p2211 = scmp.le.s32.totalorder 2, %s12
      // Predicated region
      $region37: #{tpu_custom_call.1} parent=5 // pred_check
        %p2212 = pneg %p2211
      $region38: #{tpu_custom_call.1} parent=5 // pred_check_branch
        %2214 = sbr.rel (%p2212) target = $region40
      $region39: #{tpu_custom_call.1} parent=5 // pred_region
        %s2215 = ssub.s32 %s12, 2
        // Predicated region
        $region41: #{tpu_custom_call.1} parent=39 // pred_check
          %p2216 = pneg %p109
        $region42: #{tpu_custom_call.1} parent=39 // pred_check_branch
          %2218 = sbr.rel (%p2216) target = $region44
        $region43: #{tpu_custom_call.1} parent=39 // pred_region
          %s2219 = sand.u32 %s94, 1
          %s2220 = scalar_lea.sflag [#allocation3], %s2219
          %s2221 = sand.u32 %s94, 1
          %s2222 = smul.addr %s2221, 256
          %s2223 = scalar_lea.vmem [#allocation2], %s2222
          %2224 = dma.done %s2220, 4096
        $region44: #{tpu_custom_call.1} parent=39 // pred_fallthru
          _
      $region40: #{tpu_custom_call.1} parent=5 // pred_fallthru
        _
    $region6: #{tpu_custom_call.1} parent=1 // loop_footer
      %s16 = sadd.s32 1, %s12
    $region7: #{tpu_custom_call.1} parent=1 // loop_footer_branch
      %11 = sbr.rel target = $region3
    $region8: #{tpu_custom_call.1} parent=1 // loop_exit
      _
    %2225 = vsyncpa [#allocation3], 1
    %s2226 = scalar_lea.sflag [#allocation3], 1
    %2227 = vsyncpa %s2226, 1

</llo_original>
